<compile_context>
chip_gen: v6e
topology: v6e:2x2x1
jax: 0.10.0
libtpu: 0.0.40
codegen_flags: <defaults>
</compile_context>

<pallas_src>
import functools
import math

import jax
import jax.numpy as jnp
from jax.experimental import pallas as pl
from jax.experimental.pallas import tpu as pltpu


# ----------------------------------------------------------------------------
# generation-gated tiling / VMEM budgets
# ----------------------------------------------------------------------------
def _tpu_vmem_bytes():
    # 128 MiB on v5e/v6e, 64 MiB on v7x.  Fall back to the conservative v7x
    # number if the query is unavailable.
    try:
        return int(pltpu.get_tpu_info().vmem_capacity_bytes)
    except Exception:
        return 64 << 20


_TPU_VMEM = _tpu_vmem_bytes()
# Bigger row tiles amortize the ~0.35us/step overhead on mem-bound kernels;
# only affordable on 128 MiB parts.
_MAX_ROW_TILE = 1024 if _TPU_VMEM >= (96 << 20) else 512
_MAX_COL_TILE = 512


def _row_tile(m):
    return m if m <= _MAX_ROW_TILE else _MAX_ROW_TILE


def _col_tile(n):
    if n <= _MAX_COL_TILE:
        return n
    for t in (512, 384, 256, 128):
        if n % t == 0:
            return t
    return n


def _vmem_limit(tile_bytes):
    # Derived per-kernel limit: double-buffered pipeline tiles + scratch
    # headroom, clamped to 3/4 of the part's physical VMEM.
    need = 2 * int(tile_bytes) + (8 << 20)
    return int(min(max(need, 16 << 20), (3 * _TPU_VMEM) // 4))


def _mosaic_params(vmem_bytes, n_parallel_axes):
    return pltpu.CompilerParams(
        dimension_semantics=("parallel",) * n_parallel_axes,
        vmem_limit_bytes=vmem_bytes,
    )


# ----------------------------------------------------------------------------
# in-kernel math helpers (f32 elementwise, downconvert only at the store)
# ----------------------------------------------------------------------------
def _gelu_f32(y):
    # tanh-form GELU: one EUP tanh + ~5 VALU ops per element.
    # TODO(synk): torch.nn.GELU defaults to exact erf; the tanh form differs
    # by ~1e-3 absolute — acceptable for inference.
    c = math.sqrt(2.0 / math.pi)
    return 0.5 * y * (1.0 + jnp.tanh(c * (y + 0.044715 * y * y * y)))


def _layernorm_f32(x, gamma, beta, eps):
    mu = jnp.mean(x, axis=-1, keepdims=True)
    var = jnp.mean(jnp.square(x - mu), axis=-1, keepdims=True)
    return (x - mu) * jax.lax.rsqrt(var + eps) * gamma + beta


# ----------------------------------------------------------------------------
# Pallas kernels
# ----------------------------------------------------------------------------
def _matmul_bias_kernel(x_ref, w_ref, b_ref, o_ref, *, activation):
    # bf16 operands straight to the MXU, f32 accumulation.
    y = jnp.dot(x_ref[...], w_ref[...], preferred_element_type=jnp.float32)
    y = y + b_ref[...].astype(jnp.float32)
    if activation == "gelu":
        y = _gelu_f32(y)
    o_ref[...] = y.astype(o_ref.dtype)


def _ln_matmul_bias_kernel(x_ref, g_ref, bt_ref, w_ref, b_ref, o_ref, *,
                           eps, activation):
    # fused: LayerNorm prologue (f32) -> bf16 MXU matmul -> bias (+GELU).
    x = x_ref[...].astype(jnp.float32)
    xn = _layernorm_f32(x, g_ref[...].astype(jnp.float32),
                        bt_ref[...].astype(jnp.float32), eps)
    y = jnp.dot(xn.astype(w_ref.dtype), w_ref[...],
                preferred_element_type=jnp.float32)
    y = y + b_ref[...].astype(jnp.float32)
    if activation == "gelu":
        y = _gelu_f32(y)
    o_ref[...] = y.astype(o_ref.dtype)


def _matmul_bias_residual_kernel(x_ref, w_ref, b_ref, r_ref, o_ref):
    # fused: matmul -> bias -> residual add epilogue (residual kept f32).
    y = jnp.dot(x_ref[...], w_ref[...], preferred_element_type=jnp.float32)
    y = y + b_ref[...].astype(jnp.float32) + r_ref[...].astype(jnp.float32)
    o_ref[...] = y.astype(o_ref.dtype)


def _layernorm_kernel(x_ref, g_ref, b_ref, o_ref, *, eps):
    x = x_ref[...].astype(jnp.float32)
    y = _layernorm_f32(x, g_ref[...].astype(jnp.float32),
                       b_ref[...].astype(jnp.float32), eps)
    o_ref[...] = y.astype(o_ref.dtype)


def _attention_kernel(q_ref, k_ref, v_ref, o_ref, *, hp, dh):
    # One (batch element, 128-lane head group) per grid step.  The softmax
    # scale is pre-folded into the q columns of qkv_w/qkv_b at trace time.
    q = q_ref[0]          # (T, hp*dh) bf16, lane-dense block
    k = k_ref[0]
    v = v_ref[0]
    outs = []
    for h in range(hp):
        sl = slice(h * dh, (h + 1) * dh)
        # q @ k^T without materializing a transpose: contract last dims.
        s = jax.lax.dot_general(q[:, sl], k[:, sl], (((1,), (1,)), ((), ())),
                                preferred_element_type=jnp.float32)
        s = s - jnp.max(s, axis=-1, keepdims=True)
        p = jnp.exp(s)
        p = p * pl.reciprocal(jnp.sum(p, axis=-1, keepdims=True), approx=True)
        outs.append(jnp.dot(p.astype(v.dtype), v[:, sl],
                            preferred_element_type=jnp.float32))
    o = outs[0] if hp == 1 else jnp.concatenate(outs, axis=-1)
    o_ref[0] = o.astype(o_ref.dtype)


# ----------------------------------------------------------------------------
# pallas_call wrappers (row+col tiled, parallel grids)
# ----------------------------------------------------------------------------
def matmul_bias(x, w, b, activation=None, out_dtype=None):
    M, K = x.shape
    _, N = w.shape
    out_dtype = jnp.dtype(out_dtype or x.dtype)
    tm, tn = _row_tile(M), _col_tile(N)
    tile_bytes = (tm * K + K * tn) * x.dtype.itemsize \
        + tm * tn * (4 + out_dtype.itemsize)
    return pl.pallas_call(
        functools.partial(_matmul_bias_kernel, activation=activation),
        out_shape=jax.ShapeDtypeStruct((M, N), out_dtype),
        grid=(pl.cdiv(M, tm), pl.cdiv(N, tn)),
        in_specs=[
            pl.BlockSpec((tm, K), lambda i, j: (i, 0)),
            pl.BlockSpec((K, tn), lambda i, j: (0, j)),
            pl.BlockSpec((1, tn), lambda i, j: (0, j)),
        ],
        out_specs=pl.BlockSpec((tm, tn), lambda i, j: (i, j)),
        compiler_params=_mosaic_params(_vmem_limit(tile_bytes), 2),
    )(x, w, b.reshape(1, N))


def ln_matmul_bias(x, gamma, beta, w, b, eps, activation=None, out_dtype=None):
    M, K = x.shape
    _, N = w.shape
    out_dtype = jnp.dtype(out_dtype or x.dtype)
    tm, tn = _row_tile(M), _col_tile(N)
    tile_bytes = tm * K * x.dtype.itemsize + K * tn * w.dtype.itemsize \
        + 2 * K * 4 + tm * K * 4 + tm * tn * (4 + out_dtype.itemsize)
    return pl.pallas_call(
        functools.partial(_ln_matmul_bias_kernel, eps=eps,
                          activation=activation),
        out_shape=jax.ShapeDtypeStruct((M, N), out_dtype),
        grid=(pl.cdiv(M, tm), pl.cdiv(N, tn)),
        in_specs=[
            pl.BlockSpec((tm, K), lambda i, j: (i, 0)),
            pl.BlockSpec((1, K), lambda i, j: (0, 0)),
            pl.BlockSpec((1, K), lambda i, j: (0, 0)),
            pl.BlockSpec((K, tn), lambda i, j: (0, j)),
            pl.BlockSpec((1, tn), lambda i, j: (0, j)),
        ],
        out_specs=pl.BlockSpec((tm, tn), lambda i, j: (i, j)),
        compiler_params=_mosaic_params(_vmem_limit(tile_bytes), 2),
    )(x, gamma.reshape(1, K), beta.reshape(1, K), w, b.reshape(1, N))


def matmul_bias_residual(x, w, b, res):
    M, K = x.shape
    _, N = w.shape
    out_dtype = jnp.dtype(res.dtype)
    tm, tn = _row_tile(M), _col_tile(N)
    tile_bytes = tm * K * x.dtype.itemsize + K * tn * w.dtype.itemsize \
        + tm * tn * (4 + 2 * out_dtype.itemsize)
    return pl.pallas_call(
        _matmul_bias_residual_kernel,
        out_shape=jax.ShapeDtypeStruct((M, N), out_dtype),
        grid=(pl.cdiv(M, tm), pl.cdiv(N, tn)),
        in_specs=[
            pl.BlockSpec((tm, K), lambda i, j: (i, 0)),
            pl.BlockSpec((K, tn), lambda i, j: (0, j)),
            pl.BlockSpec((1, tn), lambda i, j: (0, j)),
            pl.BlockSpec((tm, tn), lambda i, j: (i, j)),
        ],
        out_specs=pl.BlockSpec((tm, tn), lambda i, j: (i, j)),
        compiler_params=_mosaic_params(_vmem_limit(tile_bytes), 2),
    )(x, w, b.reshape(1, N), res)


def layernorm(x, gamma, beta, eps, out_dtype=jnp.float32):
    M, D = x.shape
    tm = _row_tile(M)
    tile_bytes = tm * D * (x.dtype.itemsize + 4 + jnp.dtype(out_dtype).itemsize)
    return pl.pallas_call(
        functools.partial(_layernorm_kernel, eps=eps),
        out_shape=jax.ShapeDtypeStruct((M, D), out_dtype),
        grid=(pl.cdiv(M, tm),),
        in_specs=[
            pl.BlockSpec((tm, D), lambda i: (i, 0)),
            pl.BlockSpec((1, D), lambda i: (0, 0)),
            pl.BlockSpec((1, D), lambda i: (0, 0)),
        ],
        out_specs=pl.BlockSpec((tm, D), lambda i: (i, 0)),
        compiler_params=_mosaic_params(_vmem_limit(tile_bytes), 1),
    )(x, gamma.reshape(1, D), beta.reshape(1, D))


def attention(qkv, nh, dh):
    """qkv: (B, T, 3*D) with layout [q(D) | k(D) | v(D)], scale pre-folded."""
    B, T, threeD = qkv.shape
    D = nh * dh
    assert threeD == 3 * D
    if D % 128 != 0 or dh > 128 or 128 % dh != 0:
        # TODO(synk): head layouts that don't pack into 128-lane groups would
        # need a whole-slab fallback; all DINO ViT configs (dh=64, D in
        # {384, 768}) satisfy this.
        raise NotImplementedError("head dims must pack into 128-lane groups")
    dg = 128                 # lane width per grid step (lane-dense blocks)
    hp = dg // dh            # heads per group (2 at dh=64)
    G = D // dg              # number of head groups
    tile_bytes = 4 * T * dg * qkv.dtype.itemsize + 2 * hp * T * T * 4
    # q/k/v are three lane-aligned BlockSpec windows onto the same qkv slab:
    # no host-side split/transpose, no in-kernel 64-lane slab slicing.
    return pl.pallas_call(
        functools.partial(_attention_kernel, hp=hp, dh=dh),
        out_shape=jax.ShapeDtypeStruct((B, T, D), qkv.dtype),
        grid=(B, G),
        in_specs=[
            pl.BlockSpec((1, T, dg), lambda b, g: (b, 0, g)),
            pl.BlockSpec((1, T, dg), lambda b, g: (b, 0, g + G)),
            pl.BlockSpec((1, T, dg), lambda b, g: (b, 0, g + 2 * G)),
        ],
        out_specs=pl.BlockSpec((1, T, dg), lambda b, g: (b, 0, g)),
        compiler_params=_mosaic_params(_vmem_limit(tile_bytes), 2),
    )(qkv, qkv, qkv)


# ----------------------------------------------------------------------------
# model definition (DINOv1 ViT/16 semantics, scaled-down lane-dense config)
# ----------------------------------------------------------------------------
class Config:
    patch_size = 16      # dino_vits16 patch size -> K = 3*16*16 = 768 (aligned)
    in_chans = 3
    embed_dim = 128      # (real vits16: 384) — small but 128-lane dense
    depth = 2            # (real: 12)
    num_heads = 2        # (real: 6) — dh = 64 like the real model
    mlp_ratio = 4
    eps = 1e-6


def init_params(key, cfg, num_tokens):
    D = cfg.embed_dim
    hidden = cfg.mlp_ratio * D
    pdim = cfg.in_chans * cfg.patch_size ** 2
    keys = jax.random.split(key, 4 + cfg.depth)

    def nrm(k, shape, std=0.02):
        return std * jax.random.normal(k, shape, dtype=jnp.float32)

    params = {
        "patch_w": nrm(keys[0], (pdim, D)),            # Conv2d weight, unfolded
        "patch_b": jnp.zeros((D,), jnp.float32),
        "cls_token": nrm(keys[1], (1, 1, D)),
        "pos_embed": nrm(keys[2], (1, num_tokens, D)),
        "norm_g": jnp.ones((D,), jnp.float32),
        "norm_b": jnp.zeros((D,), jnp.float32),
        "blocks": [],
    }
    for i in range(cfg.depth):
        bk = jax.random.split(keys[4 + i], 4)
        params["blocks"].append({
            "norm1_g": jnp.ones((D,), jnp.float32),
            "norm1_b": jnp.zeros((D,), jnp.float32),
            "qkv_w": nrm(bk[0], (D, 3 * D)),
            "qkv_b": jnp.zeros((3 * D,), jnp.float32),
            "proj_w": nrm(bk[1], (D, D)),
            "proj_b": jnp.zeros((D,), jnp.float32),
            "norm2_g": jnp.ones((D,), jnp.float32),
            "norm2_b": jnp.zeros((D,), jnp.float32),
            "fc1_w": nrm(bk[2], (D, hidden)),
            "fc1_b": jnp.zeros((hidden,), jnp.float32),
            "fc2_w": nrm(bk[3], (hidden, D)),
            "fc2_b": jnp.zeros((D,), jnp.float32),
        })
    return params


def dino_vit_forward(params, x, cfg):
    B, C, H, W = x.shape
    p = cfg.patch_size
    D = cfg.embed_dim
    Hh, Ww = H // p, W // p
    Np = Hh * Ww
    T = Np + 1
    nh = cfg.num_heads
    dh = D // nh
    cdt = jnp.bfloat16   # bf16 MXU inputs, f32 accumulation / elementwise

    # softmax scale folded into the q columns of qkv_w/qkv_b (trace-time, free)
    scale = dh ** -0.5
    qscale = jnp.concatenate([jnp.full((D,), scale, jnp.float32),
                              jnp.ones((2 * D,), jnp.float32)])

    # --- patch embedding: Conv2d(k=p, s=p) == matmul over unfolded patches.
    # Patch vectors ordered (C, ph, pw) to match Conv2d weight flattening.
    patches = x.reshape(B, C, Hh, p, Ww, p).transpose(0, 2, 4, 1, 3, 5)
    patches = patches.reshape(B * Np, C * p * p).astype(cdt)
    tok = matmul_bias(patches, params["patch_w"].astype(cdt),
                      params["patch_b"], out_dtype=jnp.float32)
    tok = tok.reshape(B, Np, D)

    # --- prepend CLS token, add positional embedding (f32)
    cls = jnp.broadcast_to(params["cls_token"], (B, 1, D))
    tok = jnp.concatenate([cls, tok], axis=1)
    # TODO(synk): the reference model bicubically interpolates pos_embed for
    # arbitrary resolutions; pos_embed is built at this exact token count so
    # the interpolation is the identity.
    tok = tok + params["pos_embed"]

    # residual stream kept in f32 (bf16 only at MXU inputs) to avoid bf16
    # accumulation drift over depth vs. the f32 PyTorch reference.
    xflat = tok.reshape(B * T, D).astype(jnp.float32)
    for blk in params["blocks"]:
        # --- MHSA: LN fused into qkv matmul; residual fused into proj matmul.
        qkv_w = (blk["qkv_w"] * qscale[None, :]).astype(cdt)
        qkv_b = blk["qkv_b"] * qscale
        qkv = ln_matmul_bias(xflat, blk["norm1_g"], blk["norm1_b"],
                             qkv_w, qkv_b, cfg.eps, out_dtype=cdt)
        o = attention(qkv.reshape(B, T, 3 * D), nh, dh)        # (B, T, D)
        xflat = matmul_bias_residual(o.reshape(B * T, D),
                                     blk["proj_w"].astype(cdt),
                                     blk["proj_b"], xflat)
        # --- MLP: LN + GELU fused into fc1; residual fused into fc2.
        h = ln_matmul_bias(xflat, blk["norm2_g"], blk["norm2_b"],
                           blk["fc1_w"].astype(cdt), blk["fc1_b"], cfg.eps,
                           activation="gelu", out_dtype=cdt)
        xflat = matmul_bias_residual(h, blk["fc2_w"].astype(cdt),
                                     blk["fc2_b"], xflat)

    # --- final norm on the CLS rows only (LN is per-row), head == Identity.
    xcls = xflat.reshape(B, T, D)[:, 0, :]
    return layernorm(xcls, params["norm_g"], params["norm_b"], cfg.eps,
                     out_dtype=jnp.float32)


# ----------------------------------------------------------------------------
if __name__ == "__main__":
    cfg = Config()
    key = jax.random.PRNGKey(0)
    k_param, k_x = jax.random.split(key)

    B, C, H, W = 2, 3, 32, 32            # 2x2 patches + CLS = 5 tokens
    num_tokens = (H // cfg.patch_size) * (W // cfg.patch_size) + 1

    params = init_params(k_param, cfg, num_tokens)
    x = jax.random.normal(k_x, (B, C, H, W), dtype=jnp.float32)

    fwd = jax.jit(functools.partial(dino_vit_forward, cfg=cfg))
    out = fwd(params, x)
    out = jax.block_until_ready(out)
    assert out.shape == (B, cfg.embed_dim) and out.dtype == jnp.float32
    print("KERNEL_OK")
</pallas_src>

<mosaic_0001>
module attributes {stable_mosaic.version = 11 : i64} {
  func.func @_matmul_bias_kernel(%arg0: i32, %arg1: i32, %arg2: memref<8x768xbf16, #tpu.memory_space<vmem>>, %arg3: memref<768x128xbf16, #tpu.memory_space<vmem>>, %arg4: memref<1x128xf32, #tpu.memory_space<vmem>>, %arg5: memref<8x128xf32, #tpu.memory_space<vmem>>) attributes {dimension_semantics = [#tpu.dimension_semantics<parallel>, #tpu.dimension_semantics<parallel>], iteration_bounds = array<i64: 1, 1>, scalar_prefetch = 0 : i64, scratch_operands = 0 : i64, tpu.core_type = #tpu.core_type<tc>, window_params = [{transform_indices = @transform_0, window_bounds = array<i64: 8, 768>}, {transform_indices = @transform_1, window_bounds = array<i64: 768, 128>}, {transform_indices = @transform_2, window_bounds = array<i64: 1, 128>}, {transform_indices = @transform_3, window_bounds = array<i64: 8, 128>}]} {
    %c0 = arith.constant 0 : index
    %c0_0 = arith.constant 0 : index
    %0 = vector.load %arg2[%c0, %c0_0] : memref<8x768xbf16, #tpu.memory_space<vmem>>, vector<8x768xbf16>
    %c0_1 = arith.constant 0 : index
    %c0_2 = arith.constant 0 : index
    %1 = vector.load %arg3[%c0_1, %c0_2] : memref<768x128xbf16, #tpu.memory_space<vmem>>, vector<768x128xbf16>
    %cst = arith.constant dense<0.000000e+00> : vector<8x128xf32>
    %2 = tpu.matmul %0, %1, %cst {dimension_numbers = #tpu.dot_dimension_numbers<[1], [0], [0], [1], [0, 0, 1, 1], [], []>} : vector<8x768xbf16>, vector<768x128xbf16>, vector<8x128xf32> -> vector<8x128xf32>
    %c0_3 = arith.constant 0 : index
    %c0_4 = arith.constant 0 : index
    %3 = vector.load %arg4[%c0_3, %c0_4] : memref<1x128xf32, #tpu.memory_space<vmem>>, vector<1x128xf32>
    %4 = vector.broadcast %3 : vector<1x128xf32> to vector<8x128xf32>
    %5 = arith.addf %2, %4 : vector<8x128xf32>
    %c0_5 = arith.constant 0 : index
    %c0_6 = arith.constant 0 : index
    %6 = vector.load %arg5[%c0_5, %c0_6] : memref<8x128xf32, #tpu.memory_space<vmem>>, vector<8x128xf32>
    tpu.vector_store %arg5[%c0_5, %c0_6], %5 {strides = array<i32>} : memref<8x128xf32, #tpu.memory_space<vmem>>, vector<8x128xf32>,
    return
  }
  func.func @transform_0(%arg0: i32, %arg1: i32) -> (i32, i32) {
    %c0_i32 = arith.constant 0 : i32
    %c0_i32_0 = arith.constant 0 : i32
    return %arg0, %c0_i32 : i32, i32
  }
  func.func @transform_1(%arg0: i32, %arg1: i32) -> (i32, i32) {
    %c0_i32 = arith.constant 0 : i32
    %c0_i32_0 = arith.constant 0 : i32
    return %c0_i32, %arg1 : i32, i32
  }
  func.func @transform_2(%arg0: i32, %arg1: i32) -> (i32, i32) {
    %c0_i32 = arith.constant 0 : i32
    %c0_i32_0 = arith.constant 0 : i32
    return %c0_i32, %arg1 : i32, i32
  }
  func.func @transform_3(%arg0: i32, %arg1: i32) -> (i32, i32) {
    %c0_i32 = arith.constant 0 : i32
    return %arg0, %arg1 : i32, i32
  }
}

module attributes {stable_mosaic.version = 11 : i64} {
  func.func @_ln_matmul_bias_kernel(%arg0: i32, %arg1: i32, %arg2: memref<10x128xf32, #tpu.memory_space<vmem>>, %arg3: memref<1x128xf32, #tpu.memory_space<vmem>>, %arg4: memref<1x128xf32, #tpu.memory_space<vmem>>, %arg5: memref<128x384xbf16, #tpu.memory_space<vmem>>, %arg6: memref<1x384xf32, #tpu.memory_space<vmem>>, %arg7: memref<10x384xbf16, #tpu.memory_space<vmem>>) attributes {dimension_semantics = [#tpu.dimension_semantics<parallel>, #tpu.dimension_semantics<parallel>], iteration_bounds = array<i64: 1, 1>, scalar_prefetch = 0 : i64, scratch_operands = 0 : i64, tpu.core_type = #tpu.core_type<tc>, window_params = [{transform_indices = @transform_0, window_bounds = array<i64: 10, 128>}, {pipeline_mode = #tpu.pipeline_mode<synchronous>, transform_indices = @transform_1, window_bounds = array<i64: 1, 128>}, {pipeline_mode = #tpu.pipeline_mode<synchronous>, transform_indices = @transform_2, window_bounds = array<i64: 1, 128>}, {transform_indices = @transform_3, window_bounds = array<i64: 128, 384>}, {transform_indices = @transform_4, window_bounds = array<i64: 1, 384>}, {transform_indices = @transform_5, window_bounds = array<i64: 10, 384>}]} {
    %c0 = arith.constant 0 : index
    %c0_0 = arith.constant 0 : index
    %0 = vector.load %arg2[%c0, %c0_0] : memref<10x128xf32, #tpu.memory_space<vmem>>, vector<10x128xf32>
    %c0_1 = arith.constant 0 : index
    %c0_2 = arith.constant 0 : index
    %1 = vector.load %arg3[%c0_1, %c0_2] : memref<1x128xf32, #tpu.memory_space<vmem>>, vector<1x128xf32>
    %c0_3 = arith.constant 0 : index
    %c0_4 = arith.constant 0 : index
    %2 = vector.load %arg4[%c0_3, %c0_4] : memref<1x128xf32, #tpu.memory_space<vmem>>, vector<1x128xf32>
    %cst = arith.constant dense<0.000000e+00> : vector<10xf32>
    %3 = vector.multi_reduction <add>, %0, %cst [1] : vector<10x128xf32> to vector<10xf32>
    %4 = vector.shape_cast %3 : vector<10xf32> to vector<10x1xf32>
    %cst_5 = arith.constant 1.280000e+02 : f32
    %5 = vector.broadcast %cst_5 : f32 to vector<10x1xf32>
    %6 = arith.divf %4, %5 : vector<10x1xf32>
    %7 = vector.broadcast %6 : vector<10x1xf32> to vector<10x128xf32>
    %8 = arith.subf %0, %7 : vector<10x128xf32>
    %9 = arith.mulf %8, %8 : vector<10x128xf32>
    %cst_6 = arith.constant dense<0.000000e+00> : vector<10xf32>
    %10 = vector.multi_reduction <add>, %9, %cst_6 [1] : vector<10x128xf32> to vector<10xf32>
    %11 = vector.shape_cast %10 : vector<10xf32> to vector<10x1xf32>
    %cst_7 = arith.constant 1.280000e+02 : f32
    %12 = vector.broadcast %cst_7 : f32 to vector<10x1xf32>
    %13 = arith.divf %11, %12 : vector<10x1xf32>
    %14 = vector.broadcast %6 : vector<10x1xf32> to vector<10x128xf32>
    %15 = arith.subf %0, %14 : vector<10x128xf32>
    %cst_8 = arith.constant 9.99999997E-7 : f32
    %16 = vector.broadcast %cst_8 : f32 to vector<10x1xf32>
    %17 = arith.addf %13, %16 : vector<10x1xf32>
    %18 = math.rsqrt %17 : vector<10x1xf32>
    %19 = vector.broadcast %18 : vector<10x1xf32> to vector<10x128xf32>
    %20 = arith.mulf %15, %19 : vector<10x128xf32>
    %21 = vector.broadcast %1 : vector<1x128xf32> to vector<10x128xf32>
    %22 = arith.mulf %20, %21 : vector<10x128xf32>
    %23 = vector.broadcast %2 : vector<1x128xf32> to vector<10x128xf32>
    %24 = arith.addf %22, %23 : vector<10x128xf32>
    %25 = arith.truncf %24 : vector<10x128xf32> to vector<10x128xbf16>
    %c0_9 = arith.constant 0 : index
    %c0_10 = arith.constant 0 : index
    %26 = vector.load %arg5[%c0_9, %c0_10] : memref<128x384xbf16, #tpu.memory_space<vmem>>, vector<128x384xbf16>
    %cst_11 = arith.constant dense<0.000000e+00> : vector<10x384xf32>
    %27 = tpu.matmul %25, %26, %cst_11 {dimension_numbers = #tpu.dot_dimension_numbers<[1], [0], [0], [1], [0, 0, 1, 1], [], []>} : vector<10x128xbf16>, vector<128x384xbf16>, vector<10x384xf32> -> vector<10x384xf32>
    %c0_12 = arith.constant 0 : index
    %c0_13 = arith.constant 0 : index
    %28 = vector.load %arg6[%c0_12, %c0_13] : memref<1x384xf32, #tpu.memory_space<vmem>>, vector<1x384xf32>
    %29 = vector.broadcast %28 : vector<1x384xf32> to vector<10x384xf32>
    %30 = arith.addf %27, %29 : vector<10x384xf32>
    %31 = arith.truncf %30 : vector<10x384xf32> to vector<10x384xbf16>
    %c0_14 = arith.constant 0 : index
    %c0_15 = arith.constant 0 : index
    %32 = vector.load %arg7[%c0_14, %c0_15] : memref<10x384xbf16, #tpu.memory_space<vmem>>, vector<10x384xbf16>
    tpu.vector_store %arg7[%c0_14, %c0_15], %31 {strides = array<i32>} : memref<10x384xbf16, #tpu.memory_space<vmem>>, vector<10x384xbf16>,
    return
  }
  func.func @transform_0(%arg0: i32, %arg1: i32) -> (i32, i32) {
    %c0_i32 = arith.constant 0 : i32
    %c0_i32_0 = arith.constant 0 : i32
    return %arg0, %c0_i32 : i32, i32
  }
  func.func @transform_1(%arg0: i32, %arg1: i32) -> (i32, i32) {
    %c0_i32 = arith.constant 0 : i32
    %c0_i32_0 = arith.constant 0 : i32
    %c0_i32_1 = arith.constant 0 : i32
    return %c0_i32, %c0_i32_0 : i32, i32
  }
  func.func @transform_2(%arg0: i32, %arg1: i32) -> (i32, i32) {
    %c0_i32 = arith.constant 0 : i32
    %c0_i32_0 = arith.constant 0 : i32
    %c0_i32_1 = arith.constant 0 : i32
    return %c0_i32, %c0_i32_0 : i32, i32
  }
  func.func @transform_3(%arg0: i32, %arg1: i32) -> (i32, i32) {
    %c0_i32 = arith.constant 0 : i32
    %c0_i32_0 = arith.constant 0 : i32
    return %c0_i32, %arg1 : i32, i32
  }
  func.func @transform_4(%arg0: i32, %arg1: i32) -> (i32, i32) {
    %c0_i32 = arith.constant 0 : i32
    %c0_i32_0 = arith.constant 0 : i32
    return %c0_i32, %arg1 : i32, i32
  }
  func.func @transform_5(%arg0: i32, %arg1: i32) -> (i32, i32) {
    %c0_i32 = arith.constant 0 : i32
    return %arg0, %arg1 : i32, i32
  }
}

module attributes {stable_mosaic.version = 11 : i64} {
  func.func @_attention_kernel(%arg0: i32, %arg1: i32, %arg2: memref<1x5x128xbf16, #tpu.memory_space<vmem>>, %arg3: memref<1x5x128xbf16, #tpu.memory_space<vmem>>, %arg4: memref<1x5x128xbf16, #tpu.memory_space<vmem>>, %arg5: memref<1x5x128xbf16, #tpu.memory_space<vmem>>) attributes {dimension_semantics = [#tpu.dimension_semantics<parallel>, #tpu.dimension_semantics<parallel>], iteration_bounds = array<i64: 2, 1>, scalar_prefetch = 0 : i64, scratch_operands = 0 : i64, tpu.core_type = #tpu.core_type<tc>, window_params = [{transform_indices = @transform_0, window_bounds = array<i64: 1, 5, 128>}, {transform_indices = @transform_1, window_bounds = array<i64: 1, 5, 128>}, {transform_indices = @transform_2, window_bounds = array<i64: 1, 5, 128>}, {transform_indices = @transform_3, window_bounds = array<i64: 1, 5, 128>}]} {
    %c0 = arith.constant 0 : index
    %c0_0 = arith.constant 0 : index
    %c0_1 = arith.constant 0 : index
    %0 = vector.load %arg2[%c0, %c0_0, %c0_1] : memref<1x5x128xbf16, #tpu.memory_space<vmem>>, vector<1x5x128xbf16>
    %1 = vector.shape_cast %0 : vector<1x5x128xbf16> to vector<5x128xbf16>
    %c0_2 = arith.constant 0 : index
    %c0_3 = arith.constant 0 : index
    %c0_4 = arith.constant 0 : index
    %2 = vector.load %arg3[%c0_2, %c0_3, %c0_4] : memref<1x5x128xbf16, #tpu.memory_space<vmem>>, vector<1x5x128xbf16>
    %3 = vector.shape_cast %2 : vector<1x5x128xbf16> to vector<5x128xbf16>
    %c0_5 = arith.constant 0 : index
    %c0_6 = arith.constant 0 : index
    %c0_7 = arith.constant 0 : index
    %4 = vector.load %arg4[%c0_5, %c0_6, %c0_7] : memref<1x5x128xbf16, #tpu.memory_space<vmem>>, vector<1x5x128xbf16>
    %5 = vector.shape_cast %4 : vector<1x5x128xbf16> to vector<5x128xbf16>
    %6 = vector.extract_strided_slice %1 {offsets = [0, 0], sizes = [5, 64], strides = [1, 1]} : vector<5x128xbf16> to vector<5x64xbf16>
    %7 = vector.extract_strided_slice %3 {offsets = [0, 0], sizes = [5, 64], strides = [1, 1]} : vector<5x128xbf16> to vector<5x64xbf16>
    %cst = arith.constant dense<0.000000e+00> : vector<5x5xf32>
    %8 = tpu.matmul %6, %7, %cst {dimension_numbers = #tpu.dot_dimension_numbers<[1], [1], [0], [0], [0, 0, 1, 0], [], []>} : vector<5x64xbf16>, vector<5x64xbf16>, vector<5x5xf32> -> vector<5x5xf32>
    %cst_8 = arith.constant dense<0xFF800000> : vector<5xf32>
    %9 = vector.multi_reduction <maximumf>, %8, %cst_8 [1] : vector<5x5xf32> to vector<5xf32>
    %10 = vector.shape_cast %9 : vector<5xf32> to vector<5x1xf32>
    %11 = vector.broadcast %10 : vector<5x1xf32> to vector<5x5xf32>
    %12 = arith.subf %8, %11 : vector<5x5xf32>
    %13 = math.exp %12 : vector<5x5xf32>
    %cst_9 = arith.constant dense<0.000000e+00> : vector<5xf32>
    %14 = vector.multi_reduction <add>, %13, %cst_9 [1] : vector<5x5xf32> to vector<5xf32>
    %15 = vector.shape_cast %14 : vector<5xf32> to vector<5x1xf32>
    %16 = tpu.reciprocal %15 {approx = true} : vector<5x1xf32> -> vector<5x1xf32>
    %17 = vector.broadcast %16 : vector<5x1xf32> to vector<5x5xf32>
    %18 = arith.mulf %13, %17 : vector<5x5xf32>
    %19 = arith.truncf %18 : vector<5x5xf32> to vector<5x5xbf16>
    %20 = vector.extract_strided_slice %5 {offsets = [0, 0], sizes = [5, 64], strides = [1, 1]} : vector<5x128xbf16> to vector<5x64xbf16>
    %cst_10 = arith.constant dense<0.000000e+00> : vector<5x64xf32>
    %21 = tpu.matmul %19, %20, %cst_10 {dimension_numbers = #tpu.dot_dimension_numbers<[1], [0], [0], [1], [0, 0, 1, 1], [], []>} : vector<5x5xbf16>, vector<5x64xbf16>, vector<5x64xf32> -> vector<5x64xf32>
    %22 = vector.extract_strided_slice %1 {offsets = [0, 64], sizes = [5, 64], strides = [1, 1]} : vector<5x128xbf16> to vector<5x64xbf16>
    %23 = vector.extract_strided_slice %3 {offsets = [0, 64], sizes = [5, 64], strides = [1, 1]} : vector<5x128xbf16> to vector<5x64xbf16>
    %cst_11 = arith.constant dense<0.000000e+00> : vector<5x5xf32>
    %24 = tpu.matmul %22, %23, %cst_11 {dimension_numbers = #tpu.dot_dimension_numbers<[1], [1], [0], [0], [0, 0, 1, 0], [], []>} : vector<5x64xbf16>, vector<5x64xbf16>, vector<5x5xf32> -> vector<5x5xf32>
    %cst_12 = arith.constant dense<0xFF800000> : vector<5xf32>
    %25 = vector.multi_reduction <maximumf>, %24, %cst_12 [1] : vector<5x5xf32> to vector<5xf32>
    %26 = vector.shape_cast %25 : vector<5xf32> to vector<5x1xf32>
    %27 = vector.broadcast %26 : vector<5x1xf32> to vector<5x5xf32>
    %28 = arith.subf %24, %27 : vector<5x5xf32>
    %29 = math.exp %28 : vector<5x5xf32>
    %cst_13 = arith.constant dense<0.000000e+00> : vector<5xf32>
    %30 = vector.multi_reduction <add>, %29, %cst_13 [1] : vector<5x5xf32> to vector<5xf32>
    %31 = vector.shape_cast %30 : vector<5xf32> to vector<5x1xf32>
    %32 = tpu.reciprocal %31 {approx = true} : vector<5x1xf32> -> vector<5x1xf32>
    %33 = vector.broadcast %32 : vector<5x1xf32> to vector<5x5xf32>
    %34 = arith.mulf %29, %33 : vector<5x5xf32>
    %35 = arith.truncf %34 : vector<5x5xf32> to vector<5x5xbf16>
    %36 = vector.extract_strided_slice %5 {offsets = [0, 64], sizes = [5, 64], strides = [1, 1]} : vector<5x128xbf16> to vector<5x64xbf16>
    %cst_14 = arith.constant dense<0.000000e+00> : vector<5x64xf32>
    %37 = tpu.matmul %35, %36, %cst_14 {dimension_numbers = #tpu.dot_dimension_numbers<[1], [0], [0], [1], [0, 0, 1, 1], [], []>} : vector<5x5xbf16>, vector<5x64xbf16>, vector<5x64xf32> -> vector<5x64xf32>
    %38 = tpu.concatenate %21, %37 in 1 : vector<5x64xf32>, vector<5x64xf32> -> vector<5x128xf32>
    %39 = arith.truncf %38 : vector<5x128xf32> to vector<5x128xbf16>
    %c0_15 = arith.constant 0 : index
    %c0_16 = arith.constant 0 : index
    %c0_17 = arith.constant 0 : index
    %40 = vector.load %arg5[%c0_15, %c0_16, %c0_17] : memref<1x5x128xbf16, #tpu.memory_space<vmem>>, vector<1x5x128xbf16>
    %41 = vector.shape_cast %40 : vector<1x5x128xbf16> to vector<5x128xbf16>
    %42 = vector.shape_cast %39 : vector<5x128xbf16> to vector<1x5x128xbf16>
    tpu.vector_store %arg5[%c0_15, %c0_16, %c0_17], %42 {strides = array<i32>} : memref<1x5x128xbf16, #tpu.memory_space<vmem>>, vector<1x5x128xbf16>,
    return
  }
  func.func @transform_0(%arg0: i32, %arg1: i32) -> (i32, i32, i32) {
    %c0_i32 = arith.constant 0 : i32
    %c0_i32_0 = arith.constant 0 : i32
    return %arg0, %c0_i32, %arg1 : i32, i32, i32
  }
  func.func @transform_1(%arg0: i32, %arg1: i32) -> (i32, i32, i32) {
    %c1_i32 = arith.constant 1 : i32
    %0 = arith.addi %arg1, %c1_i32 : i32
    %c0_i32 = arith.constant 0 : i32
    %c0_i32_0 = arith.constant 0 : i32
    return %arg0, %c0_i32, %0 : i32, i32, i32
  }
  func.func @transform_2(%arg0: i32, %arg1: i32) -> (i32, i32, i32) {
    %c2_i32 = arith.constant 2 : i32
    %0 = arith.addi %arg1, %c2_i32 : i32
    %c0_i32 = arith.constant 0 : i32
    %c0_i32_0 = arith.constant 0 : i32
    return %arg0, %c0_i32, %0 : i32, i32, i32
  }
  func.func @transform_3(%arg0: i32, %arg1: i32) -> (i32, i32, i32) {
    %c0_i32 = arith.constant 0 : i32
    %c0_i32_0 = arith.constant 0 : i32
    return %arg0, %c0_i32, %arg1 : i32, i32, i32
  }
}

module attributes {stable_mosaic.version = 11 : i64} {
  func.func @_matmul_bias_residual_kernel(%arg0: i32, %arg1: i32, %arg2: memref<10x128xbf16, #tpu.memory_space<vmem>>, %arg3: memref<128x128xbf16, #tpu.memory_space<vmem>>, %arg4: memref<1x128xf32, #tpu.memory_space<vmem>>, %arg5: memref<10x128xf32, #tpu.memory_space<vmem>>, %arg6: memref<10x128xf32, #tpu.memory_space<vmem>>) attributes {dimension_semantics = [#tpu.dimension_semantics<parallel>, #tpu.dimension_semantics<parallel>], iteration_bounds = array<i64: 1, 1>, scalar_prefetch = 0 : i64, scratch_operands = 0 : i64, tpu.core_type = #tpu.core_type<tc>, window_params = [{transform_indices = @transform_0, window_bounds = array<i64: 10, 128>}, {transform_indices = @transform_1, window_bounds = array<i64: 128, 128>}, {transform_indices = @transform_2, window_bounds = array<i64: 1, 128>}, {transform_indices = @transform_3, window_bounds = array<i64: 10, 128>}, {transform_indices = @transform_4, window_bounds = array<i64: 10, 128>}]} {
    %c0 = arith.constant 0 : index
    %c0_0 = arith.constant 0 : index
    %0 = vector.load %arg2[%c0, %c0_0] : memref<10x128xbf16, #tpu.memory_space<vmem>>, vector<10x128xbf16>
    %c0_1 = arith.constant 0 : index
    %c0_2 = arith.constant 0 : index
    %1 = vector.load %arg3[%c0_1, %c0_2] : memref<128x128xbf16, #tpu.memory_space<vmem>>, vector<128x128xbf16>
    %cst = arith.constant dense<0.000000e+00> : vector<10x128xf32>
    %2 = tpu.matmul %0, %1, %cst {dimension_numbers = #tpu.dot_dimension_numbers<[1], [0], [0], [1], [0, 0, 1, 1], [], []>} : vector<10x128xbf16>, vector<128x128xbf16>, vector<10x128xf32> -> vector<10x128xf32>
    %c0_3 = arith.constant 0 : index
    %c0_4 = arith.constant 0 : index
    %3 = vector.load %arg4[%c0_3, %c0_4] : memref<1x128xf32, #tpu.memory_space<vmem>>, vector<1x128xf32>
    %4 = vector.broadcast %3 : vector<1x128xf32> to vector<10x128xf32>
    %5 = arith.addf %2, %4 : vector<10x128xf32>
    %c0_5 = arith.constant 0 : index
    %c0_6 = arith.constant 0 : index
    %6 = vector.load %arg5[%c0_5, %c0_6] : memref<10x128xf32, #tpu.memory_space<vmem>>, vector<10x128xf32>
    %7 = arith.addf %5, %6 : vector<10x128xf32>
    %c0_7 = arith.constant 0 : index
    %c0_8 = arith.constant 0 : index
    %8 = vector.load %arg6[%c0_7, %c0_8] : memref<10x128xf32, #tpu.memory_space<vmem>>, vector<10x128xf32>
    tpu.vector_store %arg6[%c0_7, %c0_8], %7 {strides = array<i32>} : memref<10x128xf32, #tpu.memory_space<vmem>>, vector<10x128xf32>,
    return
  }
  func.func @transform_0(%arg0: i32, %arg1: i32) -> (i32, i32) {
    %c0_i32 = arith.constant 0 : i32
    %c0_i32_0 = arith.constant 0 : i32
    return %arg0, %c0_i32 : i32, i32
  }
  func.func @transform_1(%arg0: i32, %arg1: i32) -> (i32, i32) {
    %c0_i32 = arith.constant 0 : i32
    %c0_i32_0 = arith.constant 0 : i32
    return %c0_i32, %arg1 : i32, i32
  }
  func.func @transform_2(%arg0: i32, %arg1: i32) -> (i32, i32) {
    %c0_i32 = arith.constant 0 : i32
    %c0_i32_0 = arith.constant 0 : i32
    return %c0_i32, %arg1 : i32, i32
  }
  func.func @transform_3(%arg0: i32, %arg1: i32) -> (i32, i32) {
    %c0_i32 = arith.constant 0 : i32
    return %arg0, %arg1 : i32, i32
  }
  func.func @transform_4(%arg0: i32, %arg1: i32) -> (i32, i32) {
    %c0_i32 = arith.constant 0 : i32
    return %arg0, %arg1 : i32, i32
  }
}

module attributes {stable_mosaic.version = 11 : i64} {
  func.func @_ln_matmul_bias_kernel(%arg0: i32, %arg1: i32, %arg2: memref<10x128xf32, #tpu.memory_space<vmem>>, %arg3: memref<1x128xf32, #tpu.memory_space<vmem>>, %arg4: memref<1x128xf32, #tpu.memory_space<vmem>>, %arg5: memref<128x512xbf16, #tpu.memory_space<vmem>>, %arg6: memref<1x512xf32, #tpu.memory_space<vmem>>, %arg7: memref<10x512xbf16, #tpu.memory_space<vmem>>) attributes {dimension_semantics = [#tpu.dimension_semantics<parallel>, #tpu.dimension_semantics<parallel>], iteration_bounds = array<i64: 1, 1>, scalar_prefetch = 0 : i64, scratch_operands = 0 : i64, tpu.core_type = #tpu.core_type<tc>, window_params = [{transform_indices = @transform_0, window_bounds = array<i64: 10, 128>}, {pipeline_mode = #tpu.pipeline_mode<synchronous>, transform_indices = @transform_1, window_bounds = array<i64: 1, 128>}, {pipeline_mode = #tpu.pipeline_mode<synchronous>, transform_indices = @transform_2, window_bounds = array<i64: 1, 128>}, {transform_indices = @transform_3, window_bounds = array<i64: 128, 512>}, {transform_indices = @transform_4, window_bounds = array<i64: 1, 512>}, {transform_indices = @transform_5, window_bounds = array<i64: 10, 512>}]} {
    %c0 = arith.constant 0 : index
    %c0_0 = arith.constant 0 : index
    %0 = vector.load %arg2[%c0, %c0_0] : memref<10x128xf32, #tpu.memory_space<vmem>>, vector<10x128xf32>
    %c0_1 = arith.constant 0 : index
    %c0_2 = arith.constant 0 : index
    %1 = vector.load %arg3[%c0_1, %c0_2] : memref<1x128xf32, #tpu.memory_space<vmem>>, vector<1x128xf32>
    %c0_3 = arith.constant 0 : index
    %c0_4 = arith.constant 0 : index
    %2 = vector.load %arg4[%c0_3, %c0_4] : memref<1x128xf32, #tpu.memory_space<vmem>>, vector<1x128xf32>
    %cst = arith.constant dense<0.000000e+00> : vector<10xf32>
    %3 = vector.multi_reduction <add>, %0, %cst [1] : vector<10x128xf32> to vector<10xf32>
    %4 = vector.shape_cast %3 : vector<10xf32> to vector<10x1xf32>
    %cst_5 = arith.constant 1.280000e+02 : f32
    %5 = vector.broadcast %cst_5 : f32 to vector<10x1xf32>
    %6 = arith.divf %4, %5 : vector<10x1xf32>
    %7 = vector.broadcast %6 : vector<10x1xf32> to vector<10x128xf32>
    %8 = arith.subf %0, %7 : vector<10x128xf32>
    %9 = arith.mulf %8, %8 : vector<10x128xf32>
    %cst_6 = arith.constant dense<0.000000e+00> : vector<10xf32>
    %10 = vector.multi_reduction <add>, %9, %cst_6 [1] : vector<10x128xf32> to vector<10xf32>
    %11 = vector.shape_cast %10 : vector<10xf32> to vector<10x1xf32>
    %cst_7 = arith.constant 1.280000e+02 : f32
    %12 = vector.broadcast %cst_7 : f32 to vector<10x1xf32>
    %13 = arith.divf %11, %12 : vector<10x1xf32>
    %14 = vector.broadcast %6 : vector<10x1xf32> to vector<10x128xf32>
    %15 = arith.subf %0, %14 : vector<10x128xf32>
    %cst_8 = arith.constant 9.99999997E-7 : f32
    %16 = vector.broadcast %cst_8 : f32 to vector<10x1xf32>
    %17 = arith.addf %13, %16 : vector<10x1xf32>
    %18 = math.rsqrt %17 : vector<10x1xf32>
    %19 = vector.broadcast %18 : vector<10x1xf32> to vector<10x128xf32>
    %20 = arith.mulf %15, %19 : vector<10x128xf32>
    %21 = vector.broadcast %1 : vector<1x128xf32> to vector<10x128xf32>
    %22 = arith.mulf %20, %21 : vector<10x128xf32>
    %23 = vector.broadcast %2 : vector<1x128xf32> to vector<10x128xf32>
    %24 = arith.addf %22, %23 : vector<10x128xf32>
    %25 = arith.truncf %24 : vector<10x128xf32> to vector<10x128xbf16>
    %c0_9 = arith.constant 0 : index
    %c0_10 = arith.constant 0 : index
    %26 = vector.load %arg5[%c0_9, %c0_10] : memref<128x512xbf16, #tpu.memory_space<vmem>>, vector<128x512xbf16>
    %cst_11 = arith.constant dense<0.000000e+00> : vector<10x512xf32>
    %27 = tpu.matmul %25, %26, %cst_11 {dimension_numbers = #tpu.dot_dimension_numbers<[1], [0], [0], [1], [0, 0, 1, 1], [], []>} : vector<10x128xbf16>, vector<128x512xbf16>, vector<10x512xf32> -> vector<10x512xf32>
    %c0_12 = arith.constant 0 : index
    %c0_13 = arith.constant 0 : index
    %28 = vector.load %arg6[%c0_12, %c0_13] : memref<1x512xf32, #tpu.memory_space<vmem>>, vector<1x512xf32>
    %29 = vector.broadcast %28 : vector<1x512xf32> to vector<10x512xf32>
    %30 = arith.addf %27, %29 : vector<10x512xf32>
    %cst_14 = arith.constant 5.000000e-01 : f32
    %31 = vector.broadcast %cst_14 : f32 to vector<10x512xf32>
    %32 = arith.mulf %31, %30 : vector<10x512xf32>
    %cst_15 = arith.constant 4.471500e-02 : f32
    %33 = vector.broadcast %cst_15 : f32 to vector<10x512xf32>
    %34 = arith.mulf %33, %30 : vector<10x512xf32>
    %35 = arith.mulf %34, %30 : vector<10x512xf32>
    %36 = arith.mulf %35, %30 : vector<10x512xf32>
    %37 = arith.addf %30, %36 : vector<10x512xf32>
    %cst_16 = arith.constant 0.797884583 : f32
    %38 = vector.broadcast %cst_16 : f32 to vector<10x512xf32>
    %39 = arith.mulf %38, %37 : vector<10x512xf32>
    %40 = math.tanh %39 : vector<10x512xf32>
    %cst_17 = arith.constant 1.000000e+00 : f32
    %41 = vector.broadcast %cst_17 : f32 to vector<10x512xf32>
    %42 = arith.addf %41, %40 : vector<10x512xf32>
    %43 = arith.mulf %32, %42 : vector<10x512xf32>
    %44 = arith.truncf %43 : vector<10x512xf32> to vector<10x512xbf16>
    %c0_18 = arith.constant 0 : index
    %c0_19 = arith.constant 0 : index
    %45 = vector.load %arg7[%c0_18, %c0_19] : memref<10x512xbf16, #tpu.memory_space<vmem>>, vector<10x512xbf16>
    tpu.vector_store %arg7[%c0_18, %c0_19], %44 {strides = array<i32>} : memref<10x512xbf16, #tpu.memory_space<vmem>>, vector<10x512xbf16>,
    return
  }
  func.func @transform_0(%arg0: i32, %arg1: i32) -> (i32, i32) {
    %c0_i32 = arith.constant 0 : i32
    %c0_i32_0 = arith.constant 0 : i32
    return %arg0, %c0_i32 : i32, i32
  }
  func.func @transform_1(%arg0: i32, %arg1: i32) -> (i32, i32) {
    %c0_i32 = arith.constant 0 : i32
    %c0_i32_0 = arith.constant 0 : i32
    %c0_i32_1 = arith.constant 0 : i32
    return %c0_i32, %c0_i32_0 : i32, i32
  }
  func.func @transform_2(%arg0: i32, %arg1: i32) -> (i32, i32) {
    %c0_i32 = arith.constant 0 : i32
    %c0_i32_0 = arith.constant 0 : i32
    %c0_i32_1 = arith.constant 0 : i32
    return %c0_i32, %c0_i32_0 : i32, i32
  }
  func.func @transform_3(%arg0: i32, %arg1: i32) -> (i32, i32) {
    %c0_i32 = arith.constant 0 : i32
    %c0_i32_0 = arith.constant 0 : i32
    return %c0_i32, %arg1 : i32, i32
  }
  func.func @transform_4(%arg0: i32, %arg1: i32) -> (i32, i32) {
    %c0_i32 = arith.constant 0 : i32
    %c0_i32_0 = arith.constant 0 : i32
    return %c0_i32, %arg1 : i32, i32
  }
  func.func @transform_5(%arg0: i32, %arg1: i32) -> (i32, i32) {
    %c0_i32 = arith.constant 0 : i32
    return %arg0, %arg1 : i32, i32
  }
}

module attributes {stable_mosaic.version = 11 : i64} {
  func.func @_matmul_bias_residual_kernel(%arg0: i32, %arg1: i32, %arg2: memref<10x512xbf16, #tpu.memory_space<vmem>>, %arg3: memref<512x128xbf16, #tpu.memory_space<vmem>>, %arg4: memref<1x128xf32, #tpu.memory_space<vmem>>, %arg5: memref<10x128xf32, #tpu.memory_space<vmem>>, %arg6: memref<10x128xf32, #tpu.memory_space<vmem>>) attributes {dimension_semantics = [#tpu.dimension_semantics<parallel>, #tpu.dimension_semantics<parallel>], iteration_bounds = array<i64: 1, 1>, scalar_prefetch = 0 : i64, scratch_operands = 0 : i64, tpu.core_type = #tpu.core_type<tc>, window_params = [{transform_indices = @transform_0, window_bounds = array<i64: 10, 512>}, {transform_indices = @transform_1, window_bounds = array<i64: 512, 128>}, {transform_indices = @transform_2, window_bounds = array<i64: 1, 128>}, {transform_indices = @transform_3, window_bounds = array<i64: 10, 128>}, {transform_indices = @transform_4, window_bounds = array<i64: 10, 128>}]} {
    %c0 = arith.constant 0 : index
    %c0_0 = arith.constant 0 : index
    %0 = vector.load %arg2[%c0, %c0_0] : memref<10x512xbf16, #tpu.memory_space<vmem>>, vector<10x512xbf16>
    %c0_1 = arith.constant 0 : index
    %c0_2 = arith.constant 0 : index
    %1 = vector.load %arg3[%c0_1, %c0_2] : memref<512x128xbf16, #tpu.memory_space<vmem>>, vector<512x128xbf16>
    %cst = arith.constant dense<0.000000e+00> : vector<10x128xf32>
    %2 = tpu.matmul %0, %1, %cst {dimension_numbers = #tpu.dot_dimension_numbers<[1], [0], [0], [1], [0, 0, 1, 1], [], []>} : vector<10x512xbf16>, vector<512x128xbf16>, vector<10x128xf32> -> vector<10x128xf32>
    %c0_3 = arith.constant 0 : index
    %c0_4 = arith.constant 0 : index
    %3 = vector.load %arg4[%c0_3, %c0_4] : memref<1x128xf32, #tpu.memory_space<vmem>>, vector<1x128xf32>
    %4 = vector.broadcast %3 : vector<1x128xf32> to vector<10x128xf32>
    %5 = arith.addf %2, %4 : vector<10x128xf32>
    %c0_5 = arith.constant 0 : index
    %c0_6 = arith.constant 0 : index
    %6 = vector.load %arg5[%c0_5, %c0_6] : memref<10x128xf32, #tpu.memory_space<vmem>>, vector<10x128xf32>
    %7 = arith.addf %5, %6 : vector<10x128xf32>
    %c0_7 = arith.constant 0 : index
    %c0_8 = arith.constant 0 : index
    %8 = vector.load %arg6[%c0_7, %c0_8] : memref<10x128xf32, #tpu.memory_space<vmem>>, vector<10x128xf32>
    tpu.vector_store %arg6[%c0_7, %c0_8], %7 {strides = array<i32>} : memref<10x128xf32, #tpu.memory_space<vmem>>, vector<10x128xf32>,
    return
  }
  func.func @transform_0(%arg0: i32, %arg1: i32) -> (i32, i32) {
    %c0_i32 = arith.constant 0 : i32
    %c0_i32_0 = arith.constant 0 : i32
    return %arg0, %c0_i32 : i32, i32
  }
  func.func @transform_1(%arg0: i32, %arg1: i32) -> (i32, i32) {
    %c0_i32 = arith.constant 0 : i32
    %c0_i32_0 = arith.constant 0 : i32
    return %c0_i32, %arg1 : i32, i32
  }
  func.func @transform_2(%arg0: i32, %arg1: i32) -> (i32, i32) {
    %c0_i32 = arith.constant 0 : i32
    %c0_i32_0 = arith.constant 0 : i32
    return %c0_i32, %arg1 : i32, i32
  }
  func.func @transform_3(%arg0: i32, %arg1: i32) -> (i32, i32) {
    %c0_i32 = arith.constant 0 : i32
    return %arg0, %arg1 : i32, i32
  }
  func.func @transform_4(%arg0: i32, %arg1: i32) -> (i32, i32) {
    %c0_i32 = arith.constant 0 : i32
    return %arg0, %arg1 : i32, i32
  }
}

module attributes {stable_mosaic.version = 11 : i64} {
  func.func @_layernorm_kernel(%arg0: i32, %arg1: memref<2x128xf32, #tpu.memory_space<vmem>>, %arg2: memref<1x128xf32, #tpu.memory_space<vmem>>, %arg3: memref<1x128xf32, #tpu.memory_space<vmem>>, %arg4: memref<2x128xf32, #tpu.memory_space<vmem>>) attributes {dimension_semantics = [#tpu.dimension_semantics<parallel>], iteration_bounds = array<i64: 1>, scalar_prefetch = 0 : i64, scratch_operands = 0 : i64, tpu.core_type = #tpu.core_type<tc>, window_params = [{transform_indices = @transform_0, window_bounds = array<i64: 2, 128>}, {pipeline_mode = #tpu.pipeline_mode<synchronous>, transform_indices = @transform_1, window_bounds = array<i64: 1, 128>}, {pipeline_mode = #tpu.pipeline_mode<synchronous>, transform_indices = @transform_2, window_bounds = array<i64: 1, 128>}, {transform_indices = @transform_3, window_bounds = array<i64: 2, 128>}]} {
    %c0 = arith.constant 0 : index
    %c0_0 = arith.constant 0 : index
    %0 = vector.load %arg1[%c0, %c0_0] : memref<2x128xf32, #tpu.memory_space<vmem>>, vector<2x128xf32>
    %c0_1 = arith.constant 0 : index
    %c0_2 = arith.constant 0 : index
    %1 = vector.load %arg2[%c0_1, %c0_2] : memref<1x128xf32, #tpu.memory_space<vmem>>, vector<1x128xf32>
    %c0_3 = arith.constant 0 : index
    %c0_4 = arith.constant 0 : index
    %2 = vector.load %arg3[%c0_3, %c0_4] : memref<1x128xf32, #tpu.memory_space<vmem>>, vector<1x128xf32>
    %cst = arith.constant dense<0.000000e+00> : vector<2xf32>
    %3 = vector.multi_reduction <add>, %0, %cst [1] : vector<2x128xf32> to vector<2xf32>
    %4 = vector.shape_cast %3 : vector<2xf32> to vector<2x1xf32>
    %cst_5 = arith.constant 1.280000e+02 : f32
    %5 = vector.broadcast %cst_5 : f32 to vector<2x1xf32>
    %6 = arith.divf %4, %5 : vector<2x1xf32>
    %7 = vector.broadcast %6 : vector<2x1xf32> to vector<2x128xf32>
    %8 = arith.subf %0, %7 : vector<2x128xf32>
    %9 = arith.mulf %8, %8 : vector<2x128xf32>
    %cst_6 = arith.constant dense<0.000000e+00> : vector<2xf32>
    %10 = vector.multi_reduction <add>, %9, %cst_6 [1] : vector<2x128xf32> to vector<2xf32>
    %11 = vector.shape_cast %10 : vector<2xf32> to vector<2x1xf32>
    %cst_7 = arith.constant 1.280000e+02 : f32
    %12 = vector.broadcast %cst_7 : f32 to vector<2x1xf32>
    %13 = arith.divf %11, %12 : vector<2x1xf32>
    %14 = vector.broadcast %6 : vector<2x1xf32> to vector<2x128xf32>
    %15 = arith.subf %0, %14 : vector<2x128xf32>
    %cst_8 = arith.constant 9.99999997E-7 : f32
    %16 = vector.broadcast %cst_8 : f32 to vector<2x1xf32>
    %17 = arith.addf %13, %16 : vector<2x1xf32>
    %18 = math.rsqrt %17 : vector<2x1xf32>
    %19 = vector.broadcast %18 : vector<2x1xf32> to vector<2x128xf32>
    %20 = arith.mulf %15, %19 : vector<2x128xf32>
    %21 = vector.broadcast %1 : vector<1x128xf32> to vector<2x128xf32>
    %22 = arith.mulf %20, %21 : vector<2x128xf32>
    %23 = vector.broadcast %2 : vector<1x128xf32> to vector<2x128xf32>
    %24 = arith.addf %22, %23 : vector<2x128xf32>
    %c0_9 = arith.constant 0 : index
    %c0_10 = arith.constant 0 : index
    %25 = vector.load %arg4[%c0_9, %c0_10] : memref<2x128xf32, #tpu.memory_space<vmem>>, vector<2x128xf32>
    tpu.vector_store %arg4[%c0_9, %c0_10], %24 {strides = array<i32>} : memref<2x128xf32, #tpu.memory_space<vmem>>, vector<2x128xf32>,
    return
  }
  func.func @transform_0(%arg0: i32) -> (i32, i32) {
    %c0_i32 = arith.constant 0 : i32
    %c0_i32_0 = arith.constant 0 : i32
    return %arg0, %c0_i32 : i32, i32
  }
  func.func @transform_1(%arg0: i32) -> (i32, i32) {
    %c0_i32 = arith.constant 0 : i32
    %c0_i32_0 = arith.constant 0 : i32
    %c0_i32_1 = arith.constant 0 : i32
    return %c0_i32, %c0_i32_0 : i32, i32
  }
  func.func @transform_2(%arg0: i32) -> (i32, i32) {
    %c0_i32 = arith.constant 0 : i32
    %c0_i32_0 = arith.constant 0 : i32
    %c0_i32_1 = arith.constant 0 : i32
    return %c0_i32, %c0_i32_0 : i32, i32
  }
  func.func @transform_3(%arg0: i32) -> (i32, i32) {
    %c0_i32 = arith.constant 0 : i32
    %c0_i32_0 = arith.constant 0 : i32
    return %arg0, %c0_i32 : i32, i32
  }
}

</mosaic_0001>

<llo_original>
// kernel: dino_vit_forward.14
$region0: #{dino_vit_forward.14}
  #allocation0 [shape = 'u32[]', space=smem, size = 0x4, offset = 0x4, fixed_abs, tag = 'smem constant byte address 0x4 - core index']
  #allocation1 [shape = 'u32[144,128]{1,0:T(1,128)}', space=vmem, size = 0x12000, scoped, tag = 'internal scratch']
  %s0 = inlined_call_operand.vmem [shape: bf16[2,5,384], index: 0, kind: input, shape index: {}, may-alias: {0,1,2}]
  %s1 = inlined_call_operand.vmem [shape: bf16[2,5,384], index: 1, kind: input, shape index: {}, may-alias: {0,1,2}]
  %s2 = inlined_call_operand.vmem [shape: bf16[2,5,384], index: 2, kind: input, shape index: {}, may-alias: {0,1,2}]
  %s3 = inlined_call_operand.vmem [shape: bf16[2,5,128], index: 3, kind: output, shape index: {}]
  %s4 = sld [smem:[#allocation0]]
  $region45: #{dino_vit_forward.14} parent=0
    _
  %s6 = ssub.s32 1, %s4
  %s7 = scalar_select 0, %s6, %s4
  loop: start=0, step=1, limit=4
  $region2: #{dino_vit_forward.14} parent=0 // loop_pre_header
    _
  $region3: #{dino_vit_forward.14} parent=0 // loop_header
    %s9 = sphi 0, %s13
    %p10 = scmp.ge.s32.totalorder %s9, 4
    %s16 = sphi 0, %s28
    %s17 = sphi 0, %s24
    %s18 = sphi 0, %s16
    %s19 = sphi 0, %s17
    %s20 = sphi 0, %s18
    %s21 = sphi 0, %s19
    %s33 = sphi 0, %s35
    %s36 = sphi 0, %s33
    %s37 = sphi 0, %s36
    %s53 = sphi 0, %s37
    %s63 = sphi 0, %s65
    %s66 = sphi 0, %s63
    %s67 = sphi 0, %s66
    %s83 = sphi 0, %s67
    %s93 = sphi 0, %s95
    %s96 = sphi 0, %s93
    %s97 = sphi 0, %s96
    %s113 = sphi 0, %s97
    %s121 = sphi 0, %s123
    %s124 = sphi 0, %s121
    %s125 = sphi 0, %s124
    %s141 = sphi 0, %s125
  $region4: #{dino_vit_forward.14} parent=0 // loop_header_branch
    %12 = sbr.rel (%p10) target = $region8
  $region5: #{dino_vit_forward.14} parent=0 // loop_body
    %s14 = ssub.s32 %s9, 1
    %s15 = ssub.s32 %s9, 2
    %s22 = sadd.s32 1, %s17
    %p23 = scmp.ge.s32.totalorder %s22, 1
    %s24 = scalar_select %p23, 0, %s22
    %s25 = sadd.s32 1, %s16
    %s26 = scalar_select %p23, %s25, %s16
    %p27 = scmp.ge.s32.totalorder %s26, 2
    %s28 = scalar_select %p27, 0, %s26
    %s29 = ssub.s32 %s16, %s28
    %s30 = ssub.s32 %s17, %s24
    %s31 = sor.u32 %s29, %s30
    %p32 = scmp.eq.s32.totalorder %s31, 0
    %s34 = sadd.s32 %s33, 1
    %s35 = scalar_select %p32, %s33, %s34
    %p38 = pneg %p32
    %p39 = scmp.eq.s32.totalorder %s9, 1
    %p40 = por %p38, %p39
    %p41 = scmp.ne.s32.totalorder %s33, %s36
    %p42 = scmp.eq.s32.totalorder %s9, 0
    %p43 = por %p41, %p42
    %p44 = scmp.ne.s32.totalorder %s33, %s36
    %p45 = scmp.eq.s32.totalorder %s14, 1
    %p46 = por %p44, %p45
    %p47 = scmp.ne.s32.totalorder %s36, %s37
    %p48 = scmp.eq.s32.totalorder %s14, 0
    %p49 = por %p47, %p48
    %p50 = scmp.ne.s32.totalorder %s36, %s37
    %p51 = scmp.eq.s32.totalorder %s15, 1
    %p52 = por %p50, %p51
    %p54 = scmp.ne.s32.totalorder %s37, %s53
    %p55 = scmp.eq.s32.totalorder %s15, 0
    %p56 = por %p54, %p55
    %s57 = sadd.s32 %s17, 1
    %s58 = sadd.s32 %s24, 1
    %s59 = ssub.s32 %s16, %s28
    %s60 = ssub.s32 %s57, %s58
    %s61 = sor.u32 %s59, %s60
    %p62 = scmp.eq.s32.totalorder %s61, 0
    %s64 = sadd.s32 %s63, 1
    %s65 = scalar_select %p62, %s63, %s64
    %p68 = pneg %p62
    %p69 = scmp.eq.s32.totalorder %s9, 1
    %p70 = por %p68, %p69
    %p71 = scmp.ne.s32.totalorder %s63, %s66
    %p72 = scmp.eq.s32.totalorder %s9, 0
    %p73 = por %p71, %p72
    %p74 = scmp.ne.s32.totalorder %s63, %s66
    %p75 = scmp.eq.s32.totalorder %s14, 1
    %p76 = por %p74, %p75
    %p77 = scmp.ne.s32.totalorder %s66, %s67
    %p78 = scmp.eq.s32.totalorder %s14, 0
    %p79 = por %p77, %p78
    %p80 = scmp.ne.s32.totalorder %s66, %s67
    %p81 = scmp.eq.s32.totalorder %s15, 1
    %p82 = por %p80, %p81
    %p84 = scmp.ne.s32.totalorder %s67, %s83
    %p85 = scmp.eq.s32.totalorder %s15, 0
    %p86 = por %p84, %p85
    %s87 = sadd.s32 %s17, 2
    %s88 = sadd.s32 %s24, 2
    %s89 = ssub.s32 %s16, %s28
    %s90 = ssub.s32 %s87, %s88
    %s91 = sor.u32 %s89, %s90
    %p92 = scmp.eq.s32.totalorder %s91, 0
    %s94 = sadd.s32 %s93, 1
    %s95 = scalar_select %p92, %s93, %s94
    %p98 = pneg %p92
    %p99 = scmp.eq.s32.totalorder %s9, 1
    %p100 = por %p98, %p99
    %p101 = scmp.ne.s32.totalorder %s93, %s96
    %p102 = scmp.eq.s32.totalorder %s9, 0
    %p103 = por %p101, %p102
    %p104 = scmp.ne.s32.totalorder %s93, %s96
    %p105 = scmp.eq.s32.totalorder %s14, 1
    %p106 = por %p104, %p105
    %p107 = scmp.ne.s32.totalorder %s96, %s97
    %p108 = scmp.eq.s32.totalorder %s14, 0
    %p109 = por %p107, %p108
    %p110 = scmp.ne.s32.totalorder %s96, %s97
    %p111 = scmp.eq.s32.totalorder %s15, 1
    %p112 = por %p110, %p111
    %p114 = scmp.ne.s32.totalorder %s97, %s113
    %p115 = scmp.eq.s32.totalorder %s15, 0
    %p116 = por %p114, %p115
    %s117 = ssub.s32 %s16, %s28
    %s118 = ssub.s32 %s17, %s24
    %s119 = sor.u32 %s117, %s118
    %p120 = scmp.eq.s32.totalorder %s119, 0
    %s122 = sadd.s32 %s121, 1
    %s123 = scalar_select %p120, %s121, %s122
    %p126 = pneg %p120
    %p127 = scmp.eq.s32.totalorder %s9, 1
    %p128 = por %p126, %p127
    %p129 = scmp.ne.s32.totalorder %s121, %s124
    %p130 = scmp.eq.s32.totalorder %s9, 0
    %p131 = por %p129, %p130
    %p132 = scmp.ne.s32.totalorder %s121, %s124
    %p133 = scmp.eq.s32.totalorder %s14, 1
    %p134 = por %p132, %p133
    %p135 = scmp.ne.s32.totalorder %s124, %s125
    %p136 = scmp.eq.s32.totalorder %s14, 0
    %p137 = por %p135, %p136
    %p138 = scmp.ne.s32.totalorder %s124, %s125
    %p139 = scmp.eq.s32.totalorder %s15, 1
    %p140 = por %p138, %p139
    %p142 = scmp.ne.s32.totalorder %s125, %s141
    %p143 = scmp.eq.s32.totalorder %s15, 0
    %p144 = por %p142, %p143
    %p145 = scmp.le.s32.totalorder 1, %s9
    %p146 = scmp.lt.s32.totalorder %s9, 3
    %p147 = pnand %p145, %p146
    %p148 = pneg %p147
    // Predicated region
    $region9: #{dino_vit_forward.14} parent=5 // pred_check
      _
    $region10: #{dino_vit_forward.14} parent=5 // pred_check_branch
      %150 = sbr.rel (%p147) target = $region12
    $region11: #{dino_vit_forward.14} parent=5 // pred_region
      %s151 = ssub.s32 %s9, 1
    $region12: #{dino_vit_forward.14} parent=5 // pred_fallthru
      _
    %p152 = scmp.lt.s32.totalorder %s9, 2
    // Predicated region
    $region13: #{dino_vit_forward.14} parent=5 // pred_check
      %p153 = pneg %p152
    $region14: #{dino_vit_forward.14} parent=5 // pred_check_branch
      %155 = sbr.rel (%p153) target = $region16
    $region15: #{dino_vit_forward.14} parent=5 // pred_region
      // Predicated region
      $region17: #{dino_vit_forward.14} parent=15 // pred_check
        %p156 = pneg %p43
      $region18: #{dino_vit_forward.14} parent=15 // pred_check_branch
        %158 = sbr.rel (%p156) target = $region20
      $region19: #{dino_vit_forward.14} parent=15 // pred_region
        %p159 = scmp.lt.s32.totalorder %s16, 1
        %s160 = scalar_select %p159, %s16, 1
        %p161 = scmp.lt.s32.totalorder %s17, 2
        %s162 = scalar_select %p161, %s17, 2
        %s163 = smul.addr %s160, 3
        %s164 = sadd.s32 %s162, %s163
        %s165 = smul.addr %s164, 4
        %s166 = scalar_lea.vmem %s0, %s165
      $region20: #{dino_vit_forward.14} parent=15 // pred_fallthru
        _
      // Predicated region
      $region21: #{dino_vit_forward.14} parent=15 // pred_check
        %p167 = pneg %p73
      $region22: #{dino_vit_forward.14} parent=15 // pred_check_branch
        %169 = sbr.rel (%p167) target = $region24
      $region23: #{dino_vit_forward.14} parent=15 // pred_region
        %s170 = sadd.s32 %s17, 1
        %p171 = scmp.lt.s32.totalorder %s16, 1
        %s172 = scalar_select %p171, %s16, 1
        %p173 = scmp.lt.s32.totalorder %s170, 2
        %s174 = scalar_select %p173, %s170, 2
        %s175 = smul.addr %s172, 3
        %s176 = sadd.s32 %s174, %s175
        %s177 = smul.addr %s176, 4
        %s178 = scalar_lea.vmem %s1, %s177
        %s179 = sadd.s32 %s17, 1
      $region24: #{dino_vit_forward.14} parent=15 // pred_fallthru
        _
      // Predicated region
      $region25: #{dino_vit_forward.14} parent=15 // pred_check
        %p180 = pneg %p103
      $region26: #{dino_vit_forward.14} parent=15 // pred_check_branch
        %182 = sbr.rel (%p180) target = $region28
      $region27: #{dino_vit_forward.14} parent=15 // pred_region
        %s183 = sadd.s32 %s17, 2
        %p184 = scmp.lt.s32.totalorder %s16, 1
        %s185 = scalar_select %p184, %s16, 1
        %p186 = scmp.lt.s32.totalorder %s183, 2
        %s187 = scalar_select %p186, %s183, 2
        %s188 = smul.addr %s185, 3
        %s189 = sadd.s32 %s187, %s188
        %s190 = smul.addr %s189, 4
        %s191 = scalar_lea.vmem %s2, %s190
        %s192 = sadd.s32 %s17, 2
      $region28: #{dino_vit_forward.14} parent=15 // pred_fallthru
        _
    $region16: #{dino_vit_forward.14} parent=5 // pred_fallthru
      _
    %p193 = scmp.le.s32.totalorder 1, %s9
    %p194 = scmp.lt.s32.totalorder %s9, 3
    %p195 = pnand %p193, %p194
    %p196 = pneg %p195
    // Predicated region
    $region29: #{dino_vit_forward.14} parent=5 // pred_check
      _
    $region30: #{dino_vit_forward.14} parent=5 // pred_check_branch
      %198 = sbr.rel (%p195) target = $region32
    $region31: #{dino_vit_forward.14} parent=5 // pred_region
      %s199 = ssub.s32 %s9, 1
      %p200 = scmp.lt.s32.totalorder %s18, 1
      %s201 = scalar_select %p200, %s18, 1
      %p202 = scmp.lt.s32.totalorder %s19, 2
      %s203 = scalar_select %p202, %s19, 2
      %s204 = smul.addr %s201, 3
      %s205 = sadd.s32 %s203, %s204
      %s206 = smul.addr %s205, 4
      %s207 = scalar_lea.vmem %s0, %s206
      %p208 = pneg %p49
      %p209 = pneg %p46
      %s210 = sadd.s32 %s19, 1
      %p211 = scmp.lt.s32.totalorder %s18, 1
      %s212 = scalar_select %p211, %s18, 1
      %p213 = scmp.lt.s32.totalorder %s210, 2
      %s214 = scalar_select %p213, %s210, 2
      %s215 = smul.addr %s212, 3
      %s216 = sadd.s32 %s214, %s215
      %s217 = smul.addr %s216, 4
      %s218 = scalar_lea.vmem %s1, %s217
      %p219 = pneg %p79
      %p220 = pneg %p76
      %s221 = sadd.s32 %s19, 2
      %p222 = scmp.lt.s32.totalorder %s18, 1
      %s223 = scalar_select %p222, %s18, 1
      %p224 = scmp.lt.s32.totalorder %s221, 2
      %s225 = scalar_select %p224, %s221, 2
      %s226 = smul.addr %s223, 3
      %s227 = sadd.s32 %s225, %s226
      %s228 = smul.addr %s227, 4
      %s229 = scalar_lea.vmem %s2, %s228
      %p230 = pneg %p109
      %p231 = pneg %p106
      %p232 = pneg %p137
      %p233 = pneg %p134
      %p234 = scmp.lt.s32.totalorder %s18, 1
      %s235 = scalar_select %p234, %s18, 1
      %p236 = scmp.lt.s32.totalorder %s19, 0
      %s237 = scalar_select %p236, %s19, 0
      %s238 = sadd.s32 %s237, %s235
      %s239 = smul.addr %s238, 4
      %s240 = scalar_lea.vmem %s3, %s239
      %p241 = scmp.lt.s32.totalorder %s18, 1
      %s242 = scalar_select %p241, %s18, 1
      %p243 = scmp.lt.s32.totalorder %s19, 2
      %s244 = scalar_select %p243, %s19, 2
      %s245 = smul.addr %s242, 3
      %s246 = sadd.s32 %s244, %s245
      %s247 = smul.addr %s246, 4
      %s248 = scalar_lea.vmem %s0, %s247
      %s249 = sadd.s32 %s19, 1
      %p250 = scmp.lt.s32.totalorder %s18, 1
      %s251 = scalar_select %p250, %s18, 1
      %p252 = scmp.lt.s32.totalorder %s249, 2
      %s253 = scalar_select %p252, %s249, 2
      %s254 = smul.addr %s251, 3
      %s255 = sadd.s32 %s253, %s254
      %s256 = smul.addr %s255, 4
      %s257 = scalar_lea.vmem %s1, %s256
      %s258 = sadd.s32 %s19, 1
      %s259 = sadd.s32 %s19, 2
      %p260 = scmp.lt.s32.totalorder %s18, 1
      %s261 = scalar_select %p260, %s18, 1
      %p262 = scmp.lt.s32.totalorder %s259, 2
      %s263 = scalar_select %p262, %s259, 2
      %s264 = smul.addr %s261, 3
      %s265 = sadd.s32 %s263, %s264
      %s266 = smul.addr %s265, 4
      %s267 = scalar_lea.vmem %s2, %s266
      %s268 = sadd.s32 %s19, 2
      %p269 = scmp.lt.s32.totalorder %s18, 1
      %s270 = scalar_select %p269, %s18, 1
      %p271 = scmp.lt.s32.totalorder %s19, 0
      %s272 = scalar_select %p271, %s19, 0
      %s273 = sadd.s32 %s272, %s270
      %s274 = smul.addr %s273, 4
      %s275 = scalar_lea.vmem %s3, %s274
      %v277 = vld [vmem:[%s248] sm:$0x7]
      %v278 = vld [vmem:[%s257] sm:$0x7]
      %v279 = vld [vmem:[%s267] sm:$0x7]
      %vm280 = vcmask 523264
      %v282 = vsel %vm280, %v277, 0
      %v285 = vsel %vm280, %v278, 0
      %287 = vmatprep.subr.bf16.mxu0 0
      %288 = vmatpush1.bf16.xpose.msra.mxu0 0
      %289 = vmatprep.subr.bf16.mxu0 0
      %290 = vmatpush1.bf16.xpose.msra.mxu0 0
      %291 = vmatprep.subr.bf16.mxu0 0
      %292 = vmatpush1.bf16.xpose.msra.mxu0 0
      %293 = vmatprep.subr.bf16.mxu0 0
      %294 = vmatpush1.bf16.xpose.msra.mxu0 0
      %295 = vmatprep.subr.bf16.mxu0 0
      %296 = vmatpush1.bf16.xpose.msra.mxu0 0
      %297 = vmatprep.subr.bf16.mxu0 0
      %298 = vmatpush1.bf16.xpose.msra.mxu0 0
      %299 = vmatprep.subr.bf16.mxu0 0
      %300 = vmatpush1.bf16.xpose.msra.mxu0 0
      %301 = vmatprep.subr.bf16.mxu0 0
      %302 = vmatpush1.bf16.xpose.msra.mxu0 %v285
      %303 = vmatprep.subr.bf16.mxu0 0
      %304 = vmatpush2.bf16.xpose.msra.mxu0 0
      %305 = vmatprep.subr.bf16.mxu0 0
      %306 = vmatpush2.bf16.xpose.msra.mxu0 0
      %307 = vmatprep.subr.bf16.mxu0 0
      %308 = vmatpush2.bf16.xpose.msra.mxu0 0
      %309 = vmatprep.subr.bf16.mxu0 0
      %310 = vmatpush2.bf16.xpose.msra.mxu0 0
      %311 = vmatprep.subr.bf16.mxu0 0
      %312 = vmatpush2.bf16.xpose.msra.mxu0 0
      %313 = vmatprep.subr.bf16.mxu0 0
      %314 = vmatpush2.bf16.xpose.msra.mxu0 0
      %315 = vmatprep.subr.bf16.mxu0 0
      %316 = vmatpush2.bf16.xpose.msra.mxu0 0
      %317 = vmatprep.subr.bf16.mxu0 0
      %318 = vmatpush2.bf16.xpose.msra.mxu0 0
      %319 = vmatprep.mubr.bf16.mxu0 0
      %320 = vmatmul.mubr.bf16.gmra.mxu0 %v282
      %v321 = vpop.f32.mrf.mxu0
      %v322 = vadd.f32 0.0, %v321
      %v323 = vpop.f32.mrf.mxu0
      %v324 = vpop.f32.mrf.mxu0
      %v325 = vpop.f32.mrf.mxu0
      %326 = vdwg.mxu0
      %vm327 = vcmask 36864
      %v328 = vsel %vm327, %v322, -inf
      %329 = vmax.xlane.f32.xlu0 %v328
      %v330 = vpop.xlane.xlu0 %329
      %v331 = vsub.f32 %v322, %v330
      %v332 = vmul.f32 %v331, 1.442695
      %v333 = vpow.pop %v332
      %v334 = vsel %vm327, %v333, 0.0
      %335 = vadd.xlane.f32.xlu0 %v334
      %v336 = vpop.xlane.xlu0 %335
      %v337 = vrcp.pop %v336
      %v338 = vmul.f32 %v333, %v337
      %v339 = vpack.c.bf16 %v338, %v338
      %vm340 = vcmask 39936
      %v342 = vsel %vm340, %v339, 0
      %vm344 = vcmask 1041408
      %vm345 = vcmask 1042432
      %v346 = vsel %vm344, 4294967295, 65535
      %v347 = vsel %vm345, %v346, 0
      %v349 = vand.u32 %v279, %v347
      %351 = vmatprep.subr.bf16.mxu0 0
      %352 = vmatpush1.bf16.msra.mxu0 0
      %353 = vmatprep.subr.bf16.mxu0 0
      %354 = vmatpush1.bf16.msra.mxu0 0
      %355 = vmatprep.subr.bf16.mxu0 0
      %356 = vmatpush1.bf16.msra.mxu0 0
      %357 = vmatprep.subr.bf16.mxu0 0
      %358 = vmatpush1.bf16.msra.mxu0 0
      %359 = vmatprep.subr.bf16.mxu0 0
      %360 = vmatpush1.bf16.msra.mxu0 0
      %361 = vmatprep.subr.bf16.mxu0 0
      %362 = vmatpush1.bf16.msra.mxu0 0
      %363 = vmatprep.subr.bf16.mxu0 0
      %364 = vmatpush1.bf16.msra.mxu0 0
      %365 = vmatprep.subr.bf16.mxu0 0
      %366 = vmatpush1.bf16.msra.mxu0 %v349
      %367 = vmatprep.subr.bf16.mxu0 0
      %368 = vmatpush2.bf16.msra.mxu0 0
      %369 = vmatprep.subr.bf16.mxu0 0
      %370 = vmatpush2.bf16.msra.mxu0 0
      %371 = vmatprep.subr.bf16.mxu0 0
      %372 = vmatpush2.bf16.msra.mxu0 0
      %373 = vmatprep.subr.bf16.mxu0 0
      %374 = vmatpush2.bf16.msra.mxu0 0
      %375 = vmatprep.subr.bf16.mxu0 0
      %376 = vmatpush2.bf16.msra.mxu0 0
      %377 = vmatprep.subr.bf16.mxu0 0
      %378 = vmatpush2.bf16.msra.mxu0 0
      %379 = vmatprep.subr.bf16.mxu0 0
      %380 = vmatpush2.bf16.msra.mxu0 0
      %381 = vmatprep.subr.bf16.mxu0 0
      %382 = vmatpush2.bf16.msra.mxu0 0
      %383 = vmatprep.mubr.bf16.mxu0 0
      %384 = vmatmul.mubr.bf16.gmra.mxu0 %v342
      %v385 = vpop.f32.mrf.mxu0
      %v386 = vadd.f32 0.0, %v385
      %v387 = vpop.f32.mrf.mxu0
      %v388 = vpop.f32.mrf.mxu0
      %v389 = vpop.f32.mrf.mxu0
      %390 = vdwg.mxu0
      %v392 = vunpack.c.l.b16 %v277
      %v393 = vpack.c.b16 %v392, %v392
      %394 = vrot.lane.b32.xlu0 %v393, 64
      %v395 = vpop.permute.xlu0 %394
      %v397 = vunpack.c.l.b16 %v278
      %v398 = vpack.c.b16 %v397, %v397
      %399 = vrot.lane.b32.xlu0 %v398, 64
      %v400 = vpop.permute.xlu0 %399
      %v402 = vsel %vm280, %v395, 0
      %v405 = vsel %vm280, %v400, 0
      %407 = vmatprep.subr.bf16.mxu0 0
      %408 = vmatpush1.bf16.xpose.msra.mxu0 0
      %409 = vmatprep.subr.bf16.mxu0 0
      %410 = vmatpush1.bf16.xpose.msra.mxu0 0
      %411 = vmatprep.subr.bf16.mxu0 0
      %412 = vmatpush1.bf16.xpose.msra.mxu0 0
      %413 = vmatprep.subr.bf16.mxu0 0
      %414 = vmatpush1.bf16.xpose.msra.mxu0 0
      %415 = vmatprep.subr.bf16.mxu0 0
      %416 = vmatpush1.bf16.xpose.msra.mxu0 0
      %417 = vmatprep.subr.bf16.mxu0 0
      %418 = vmatpush1.bf16.xpose.msra.mxu0 0
      %419 = vmatprep.subr.bf16.mxu0 0
      %420 = vmatpush1.bf16.xpose.msra.mxu0 0
      %421 = vmatprep.subr.bf16.mxu0 0
      %422 = vmatpush1.bf16.xpose.msra.mxu0 %v405
      %423 = vmatprep.subr.bf16.mxu0 0
      %424 = vmatpush2.bf16.xpose.msra.mxu0 0
      %425 = vmatprep.subr.bf16.mxu0 0
      %426 = vmatpush2.bf16.xpose.msra.mxu0 0
      %427 = vmatprep.subr.bf16.mxu0 0
      %428 = vmatpush2.bf16.xpose.msra.mxu0 0
      %429 = vmatprep.subr.bf16.mxu0 0
      %430 = vmatpush2.bf16.xpose.msra.mxu0 0
      %431 = vmatprep.subr.bf16.mxu0 0
      %432 = vmatpush2.bf16.xpose.msra.mxu0 0
      %433 = vmatprep.subr.bf16.mxu0 0
      %434 = vmatpush2.bf16.xpose.msra.mxu0 0
      %435 = vmatprep.subr.bf16.mxu0 0
      %436 = vmatpush2.bf16.xpose.msra.mxu0 0
      %437 = vmatprep.subr.bf16.mxu0 0
      %438 = vmatpush2.bf16.xpose.msra.mxu0 0
      %439 = vmatprep.mubr.bf16.mxu0 0
      %440 = vmatmul.mubr.bf16.gmra.mxu0 %v402
      %v441 = vpop.f32.mrf.mxu0
      %v442 = vadd.f32 0.0, %v441
      %v443 = vpop.f32.mrf.mxu0
      %v444 = vpop.f32.mrf.mxu0
      %v445 = vpop.f32.mrf.mxu0
      %446 = vdwg.mxu0
      %v447 = vsel %vm327, %v442, -inf
      %448 = vmax.xlane.f32.xlu0 %v447
      %v449 = vpop.xlane.xlu0 %448
      %v450 = vsub.f32 %v442, %v449
      %v451 = vmul.f32 %v450, 1.442695
      %v452 = vpow.pop %v451
      %v453 = vsel %vm327, %v452, 0.0
      %454 = vadd.xlane.f32.xlu0 %v453
      %v455 = vpop.xlane.xlu0 %454
      %v456 = vrcp.pop %v455
      %v457 = vmul.f32 %v452, %v456
      %v458 = vpack.c.bf16 %v457, %v457
      %v460 = vunpack.c.l.b16 %v279
      %v461 = vpack.c.b16 %v460, %v460
      %462 = vrot.lane.b32.xlu0 %v461, 64
      %v463 = vpop.permute.xlu0 %462
      %v465 = vsel %vm340, %v458, 0
      %v468 = vand.u32 %v463, %v347
      %470 = vmatprep.subr.bf16.mxu0 0
      %471 = vmatpush1.bf16.msra.mxu0 0
      %472 = vmatprep.subr.bf16.mxu0 0
      %473 = vmatpush1.bf16.msra.mxu0 0
      %474 = vmatprep.subr.bf16.mxu0 0
      %475 = vmatpush1.bf16.msra.mxu0 0
      %476 = vmatprep.subr.bf16.mxu0 0
      %477 = vmatpush1.bf16.msra.mxu0 0
      %478 = vmatprep.subr.bf16.mxu0 0
      %479 = vmatpush1.bf16.msra.mxu0 0
      %480 = vmatprep.subr.bf16.mxu0 0
      %481 = vmatpush1.bf16.msra.mxu0 0
      %482 = vmatprep.subr.bf16.mxu0 0
      %483 = vmatpush1.bf16.msra.mxu0 0
      %484 = vmatprep.subr.bf16.mxu0 0
      %485 = vmatpush1.bf16.msra.mxu0 %v468
      %486 = vmatprep.subr.bf16.mxu0 0
      %487 = vmatpush2.bf16.msra.mxu0 0
      %488 = vmatprep.subr.bf16.mxu0 0
      %489 = vmatpush2.bf16.msra.mxu0 0
      %490 = vmatprep.subr.bf16.mxu0 0
      %491 = vmatpush2.bf16.msra.mxu0 0
      %492 = vmatprep.subr.bf16.mxu0 0
      %493 = vmatpush2.bf16.msra.mxu0 0
      %494 = vmatprep.subr.bf16.mxu0 0
      %495 = vmatpush2.bf16.msra.mxu0 0
      %496 = vmatprep.subr.bf16.mxu0 0
      %497 = vmatpush2.bf16.msra.mxu0 0
      %498 = vmatprep.subr.bf16.mxu0 0
      %499 = vmatpush2.bf16.msra.mxu0 0
      %500 = vmatprep.subr.bf16.mxu0 0
      %501 = vmatpush2.bf16.msra.mxu0 0
      %502 = vmatprep.mubr.bf16.mxu0 0
      %503 = vmatmul.mubr.bf16.gmra.mxu0 %v465
      %v504 = vpop.f32.mrf.mxu0
      %v505 = vadd.f32 0.0, %v504
      %v506 = vpop.f32.mrf.mxu0
      %v507 = vpop.f32.mrf.mxu0
      %v508 = vpop.f32.mrf.mxu0
      %509 = vdwg.mxu0
      %511 = vrot.lane.b32.xlu0 %v505, 64
      %v512 = vpop.permute.xlu0 %511
      %v514 = vsel %vm280, %v386, %v512
      %v515 = vpack.c.bf16 %v514, %v514
      %vm516 = vcmask 1042432
      %vm517 = vsmask.f32 2304
      %vm518 = vmand %vm516, %vm517
      %v519 = vld [vmem:[%s275] sm:$0x7]
      %v520 = vsel %vm518, %v515, %v519
      %521 = vst [vmem:[%s275] sm:$0x7] %v520
      %p522 = scmp.lt.s32.totalorder %s18, 1
      %s523 = scalar_select %p522, %s18, 1
      %p524 = scmp.lt.s32.totalorder %s19, 0
      %s525 = scalar_select %p524, %s19, 0
      %s526 = sadd.s32 %s525, %s523
      %s527 = smul.addr %s526, 4
      %s528 = scalar_lea.vmem %s3, %s527
      // Predicated region
      $region33: #{dino_vit_forward.14} parent=31 // pred_check
        %p529 = pneg %p134
      $region34: #{dino_vit_forward.14} parent=31 // pred_check_branch
        %531 = sbr.rel (%p529) target = $region36
      $region35: #{dino_vit_forward.14} parent=31 // pred_region
        _
      $region36: #{dino_vit_forward.14} parent=31 // pred_fallthru
        _
    $region32: #{dino_vit_forward.14} parent=5 // pred_fallthru
      _
    %p532 = scmp.le.s32.totalorder 2, %s9
    // Predicated region
    $region37: #{dino_vit_forward.14} parent=5 // pred_check
      %p533 = pneg %p532
    $region38: #{dino_vit_forward.14} parent=5 // pred_check_branch
      %535 = sbr.rel (%p533) target = $region40
    $region39: #{dino_vit_forward.14} parent=5 // pred_region
      %s536 = ssub.s32 %s9, 2
      // Predicated region
      $region41: #{dino_vit_forward.14} parent=39 // pred_check
        %p537 = pneg %p140
      $region42: #{dino_vit_forward.14} parent=39 // pred_check_branch
        %539 = sbr.rel (%p537) target = $region44
      $region43: #{dino_vit_forward.14} parent=39 // pred_region
        %p540 = scmp.lt.s32.totalorder %s20, 1
        %s541 = scalar_select %p540, %s20, 1
        %p542 = scmp.lt.s32.totalorder %s21, 0
        %s543 = scalar_select %p542, %s21, 0
        %s544 = sadd.s32 %s543, %s541
        %s545 = smul.addr %s544, 4
        %s546 = scalar_lea.vmem %s3, %s545
      $region44: #{dino_vit_forward.14} parent=39 // pred_fallthru
        _
    $region40: #{dino_vit_forward.14} parent=5 // pred_fallthru
      _
  $region6: #{dino_vit_forward.14} parent=0 // loop_footer
    %s13 = sadd.s32 1, %s9
  $region7: #{dino_vit_forward.14} parent=0 // loop_footer_branch
    %8 = sbr.rel target = $region3
  $region8: #{dino_vit_forward.14} parent=0 // loop_exit
    _

// kernel: dino_vit_forward.15
$region0: #{dino_vit_forward.15}
  #allocation0 [shape = 'u32[]', space=smem, size = 0x4, offset = 0x4, fixed_abs, tag = 'smem constant byte address 0x4 - core index']
  #allocation1 [shape = 'u32[144,128]{1,0:T(1,128)}', space=vmem, size = 0x12000, scoped, tag = 'internal scratch']
  %s0 = inlined_call_operand.vmem [shape: bf16[10,128], index: 0, kind: input, shape index: {}]
  %s1 = inlined_call_operand.vmem [shape: bf16[128,128], index: 1, kind: input, shape index: {}]
  %s2 = inlined_call_operand.vmem [shape: f32[1,128], index: 2, kind: input, shape index: {}]
  %s3 = inlined_call_operand.vmem [shape: f32[10,128], index: 3, kind: input, shape index: {}]
  %s4 = inlined_call_operand.vmem [shape: f32[10,128], index: 4, kind: output, shape index: {}]
  %s5 = sld [smem:[#allocation0]]
  $region26: #{dino_vit_forward.15} parent=0
    _
  %s7 = ssub.s32 1, %s5
  %s8 = scalar_select 0, %s7, %s5
  // Predicated region
  $region2: #{dino_vit_forward.15} parent=0 // pred_check
    _
  $region3: #{dino_vit_forward.15} parent=0 // pred_check_branch
    %10 = sbr.rel (0) target = $region5
  $region4: #{dino_vit_forward.15} parent=0 // pred_region
    _
  $region5: #{dino_vit_forward.15} parent=0 // pred_fallthru
    _
  // Predicated region
  $region6: #{dino_vit_forward.15} parent=0 // pred_check
    _
  $region7: #{dino_vit_forward.15} parent=0 // pred_check_branch
    %12 = sbr.rel (0) target = $region9
  $region8: #{dino_vit_forward.15} parent=0 // pred_region
    _
  $region9: #{dino_vit_forward.15} parent=0 // pred_fallthru
    _
  // Predicated region
  $region10: #{dino_vit_forward.15} parent=0 // pred_check
    _
  $region11: #{dino_vit_forward.15} parent=0 // pred_check_branch
    %14 = sbr.rel (0) target = $region13
  $region12: #{dino_vit_forward.15} parent=0 // pred_region
    _
  $region13: #{dino_vit_forward.15} parent=0 // pred_fallthru
    _
  // Predicated region
  $region14: #{dino_vit_forward.15} parent=0 // pred_check
    _
  $region15: #{dino_vit_forward.15} parent=0 // pred_check_branch
    %16 = sbr.rel (0) target = $region17
  $region16: #{dino_vit_forward.15} parent=0 // pred_region
    _
  $region17: #{dino_vit_forward.15} parent=0 // pred_fallthru
    _
  %v18 = vld [vmem:[%s0] sm:$0xf]
  %v19 = vld [vmem:[%s0 + $0x4] sm:$0x1]
  %v20 = vld [vmem:[%s1] sm:$0xf]
  %v21 = vld [vmem:[%s1 + $0x4] sm:$0xf]
  %v22 = vld [vmem:[%s1 + $0x8] sm:$0xf]
  %v23 = vld [vmem:[%s1 + $0xc] sm:$0xf]
  %v24 = vld [vmem:[%s1 + $0x10] sm:$0xf]
  %v25 = vld [vmem:[%s1 + $0x14] sm:$0xf]
  %v26 = vld [vmem:[%s1 + $0x18] sm:$0xf]
  %v27 = vld [vmem:[%s1 + $0x1c] sm:$0xf]
  %v28 = vld [vmem:[%s1 + $0x20] sm:$0xf]
  %v29 = vld [vmem:[%s1 + $0x24] sm:$0xf]
  %v30 = vld [vmem:[%s1 + $0x28] sm:$0xf]
  %v31 = vld [vmem:[%s1 + $0x2c] sm:$0xf]
  %v32 = vld [vmem:[%s1 + $0x30] sm:$0xf]
  %v33 = vld [vmem:[%s1 + $0x34] sm:$0xf]
  %v34 = vld [vmem:[%s1 + $0x38] sm:$0xf]
  %v35 = vld [vmem:[%s1 + $0x3c] sm:$0xf]
  %v36 = vld [vmem:[%s2] sm:$0x1]
  %v38 = vlaneseq
  %v39 = vshrl.u32 %v38, 7
  %v40 = vsub.s32 0, %v39
  %v41 = vrot.slane %v36, %v40
  %v45 = vunpack.c.l.b16 %v18
  %v46 = vunpack.c.l.b16 %v19
  %v47 = vpack.c.b16 %v46, %v45
  %v65 = vunpack.c.l.b16 %v20
  %v66 = vunpack.c.l.b16 %v21
  %v67 = vunpack.c.l.b16 %v22
  %v68 = vunpack.c.l.b16 %v23
  %v69 = vunpack.c.l.b16 %v24
  %v70 = vunpack.c.l.b16 %v25
  %v71 = vunpack.c.l.b16 %v26
  %v72 = vunpack.c.l.b16 %v27
  %v73 = vunpack.c.l.b16 %v28
  %v74 = vunpack.c.l.b16 %v29
  %v75 = vunpack.c.l.b16 %v30
  %v76 = vunpack.c.l.b16 %v31
  %v77 = vunpack.c.l.b16 %v32
  %v78 = vunpack.c.l.b16 %v33
  %v79 = vunpack.c.l.b16 %v34
  %v80 = vunpack.c.l.b16 %v35
  %v81 = vpack.c.b16 %v66, %v65
  %v82 = vpack.c.b16 %v68, %v67
  %v83 = vpack.c.b16 %v70, %v69
  %v84 = vpack.c.b16 %v72, %v71
  %v85 = vpack.c.b16 %v74, %v73
  %v86 = vpack.c.b16 %v76, %v75
  %v87 = vpack.c.b16 %v78, %v77
  %v88 = vpack.c.b16 %v80, %v79
  %97 = vmatprep.subr.bf16.mxu0 0
  %98 = vmatpush1.bf16.msra.mxu0 %v88
  %99 = vmatprep.subr.bf16.mxu0 0
  %100 = vmatpush1.bf16.msra.mxu0 %v87
  %101 = vmatprep.subr.bf16.mxu0 0
  %102 = vmatpush1.bf16.msra.mxu0 %v86
  %103 = vmatprep.subr.bf16.mxu0 0
  %104 = vmatpush1.bf16.msra.mxu0 %v85
  %105 = vmatprep.subr.bf16.mxu0 0
  %106 = vmatpush1.bf16.msra.mxu0 %v84
  %107 = vmatprep.subr.bf16.mxu0 0
  %108 = vmatpush1.bf16.msra.mxu0 %v83
  %109 = vmatprep.subr.bf16.mxu0 0
  %110 = vmatpush1.bf16.msra.mxu0 %v82
  %111 = vmatprep.subr.bf16.mxu0 0
  %112 = vmatpush1.bf16.msra.mxu0 %v81
  %113 = vmatprep.subr.bf16.mxu0 0
  %114 = vmatpush2.bf16.msra.mxu0 0
  %115 = vmatprep.subr.bf16.mxu0 0
  %116 = vmatpush2.bf16.msra.mxu0 0
  %117 = vmatprep.subr.bf16.mxu0 0
  %118 = vmatpush2.bf16.msra.mxu0 0
  %119 = vmatprep.subr.bf16.mxu0 0
  %120 = vmatpush2.bf16.msra.mxu0 0
  %121 = vmatprep.subr.bf16.mxu0 0
  %122 = vmatpush2.bf16.msra.mxu0 0
  %123 = vmatprep.subr.bf16.mxu0 0
  %124 = vmatpush2.bf16.msra.mxu0 0
  %125 = vmatprep.subr.bf16.mxu0 0
  %126 = vmatpush2.bf16.msra.mxu0 0
  %127 = vmatprep.subr.bf16.mxu0 0
  %128 = vmatpush2.bf16.msra.mxu0 0
  %129 = vmatprep.mubr.bf16.mxu0 0
  %130 = vmatmul.mubr.bf16.gmra.mxu0 %v47
  %v131 = vpop.f32.mrf.mxu0
  %v132 = vadd.f32 %v41, %v131
  %v133 = vpop.f32.mrf.mxu0
  %v134 = vpop.f32.mrf.mxu0
  %v135 = vadd.f32 %v41, %v134
  %v136 = vpop.f32.mrf.mxu0
  %137 = vdwg.mxu0
  %v138 = vld [vmem:[%s3] sm:$0xff]
  %v139 = vld [vmem:[%s3 + $0x8] sm:$0x3]
  %v140 = vadd.f32 %v132, %v138
  %v141 = vadd.f32 %v135, %v139
  %142 = vst [vmem:[%s4] sm:$0xff] %v140
  %143 = vst [vmem:[%s4 + $0x8] sm:$0x3] %v141
  // Predicated region
  $region18: #{dino_vit_forward.15} parent=0 // pred_check
    _
  $region19: #{dino_vit_forward.15} parent=0 // pred_check_branch
    %145 = sbr.rel (0) target = $region21
  $region20: #{dino_vit_forward.15} parent=0 // pred_region
    _
  $region21: #{dino_vit_forward.15} parent=0 // pred_fallthru
    _
  // Predicated region
  $region22: #{dino_vit_forward.15} parent=0 // pred_check
    _
  $region23: #{dino_vit_forward.15} parent=0 // pred_check_branch
    %147 = sbr.rel (0) target = $region25
  $region24: #{dino_vit_forward.15} parent=0 // pred_region
    _
  $region25: #{dino_vit_forward.15} parent=0 // pred_fallthru
    _

// kernel: dino_vit_forward.13
$region0: #{dino_vit_forward.13}
  #allocation0 [shape = 'u32[]', space=smem, size = 0x4, offset = 0x4, fixed_abs, tag = 'smem constant byte address 0x4 - core index']
  #allocation1 [shape = 'u32[144,128]{1,0:T(1,128)}', space=vmem, size = 0x12000, scoped, tag = 'internal scratch']
  %s0 = inlined_call_operand.vmem [shape: f32[10,128], index: 0, kind: input, shape index: {}]
  %s1 = inlined_call_operand.vmem [shape: f32[1,128], index: 1, kind: input, shape index: {}]
  %s2 = inlined_call_operand.vmem [shape: f32[1,128], index: 2, kind: input, shape index: {}]
  %s3 = inlined_call_operand.vmem [shape: bf16[128,384], index: 3, kind: input, shape index: {}]
  %s4 = inlined_call_operand.vmem [shape: f32[1,384], index: 4, kind: input, shape index: {}]
  %s5 = inlined_call_operand.vmem [shape: bf16[10,384], index: 5, kind: output, shape index: {}]
  %s6 = sld [smem:[#allocation0]]
  $region30: #{dino_vit_forward.13} parent=0
    _
  %s8 = ssub.s32 1, %s6
  %s9 = scalar_select 0, %s8, %s6
  // Predicated region
  $region2: #{dino_vit_forward.13} parent=0 // pred_check
    _
  $region3: #{dino_vit_forward.13} parent=0 // pred_check_branch
    %11 = sbr.rel (0) target = $region5
  $region4: #{dino_vit_forward.13} parent=0 // pred_region
    _
  $region5: #{dino_vit_forward.13} parent=0 // pred_fallthru
    _
  // Predicated region
  $region6: #{dino_vit_forward.13} parent=0 // pred_check
    _
  $region7: #{dino_vit_forward.13} parent=0 // pred_check_branch
    %13 = sbr.rel (0) target = $region9
  $region8: #{dino_vit_forward.13} parent=0 // pred_region
    _
  $region9: #{dino_vit_forward.13} parent=0 // pred_fallthru
    _
  // Predicated region
  $region10: #{dino_vit_forward.13} parent=0 // pred_check
    _
  $region11: #{dino_vit_forward.13} parent=0 // pred_check_branch
    %15 = sbr.rel (0) target = $region13
  $region12: #{dino_vit_forward.13} parent=0 // pred_region
    _
  $region13: #{dino_vit_forward.13} parent=0 // pred_fallthru
    _
  // Predicated region
  $region14: #{dino_vit_forward.13} parent=0 // pred_check
    _
  $region15: #{dino_vit_forward.13} parent=0 // pred_check_branch
    %17 = sbr.rel (0) target = $region17
  $region16: #{dino_vit_forward.13} parent=0 // pred_region
    _
  $region17: #{dino_vit_forward.13} parent=0 // pred_fallthru
    _
  // Predicated region
  $region18: #{dino_vit_forward.13} parent=0 // pred_check
    _
  $region19: #{dino_vit_forward.13} parent=0 // pred_check_branch
    %19 = sbr.rel (0) target = $region21
  $region20: #{dino_vit_forward.13} parent=0 // pred_region
    _
  $region21: #{dino_vit_forward.13} parent=0 // pred_fallthru
    _
  %v21 = vld [vmem:[%s0] sm:$0xff]
  %v22 = vld [vmem:[%s0 + $0x8] sm:$0x3]
  %v23 = vld [vmem:[%s1] sm:$0x1]
  %v24 = vld [vmem:[%s2] sm:$0x1]
  %25 = vadd.xlane.f32.xlu0 %v21
  %v26 = vpop.xlane.xlu0 %25
  %vm27 = vcmask 1041408
  %v28 = vsel %vm27, %v22, 0.0
  %29 = vadd.xlane.f32.xlu0 %v28
  %v30 = vpop.xlane.xlu0 %29
  %v31 = vrcp.pop 128.0
  %v32 = vmul.f32 %v26, %v31
  %v33 = vmul.f32 %v30, %v31
  %v34 = vsub.f32 %v21, %v32
  %v35 = vsub.f32 %v22, %v33
  %v36 = vmul.f32 %v34, %v34
  %v37 = vmul.f32 %v35, %v35
  %38 = vadd.xlane.f32.xlu0 %v36
  %v39 = vpop.xlane.xlu0 %38
  %v40 = vsel %vm27, %v37, 0.0
  %41 = vadd.xlane.f32.xlu0 %v40
  %v42 = vpop.xlane.xlu0 %41
  %v43 = vmul.f32 %v39, %v31
  %v44 = vmul.f32 %v42, %v31
  %v45 = vadd.f32 %v43, 1e-06
  %v46 = vadd.f32 %v44, 1e-06
  %v47 = vrsqrt.pop %v45
  %v48 = vrsqrt.pop %v46
  %v49 = vmul.f32 %v34, %v47
  %v50 = vmul.f32 %v35, %v48
  %v52 = vlaneseq
  %v53 = vshrl.u32 %v52, 7
  %v54 = vsub.s32 0, %v53
  %v55 = vrot.slane %v23, %v54
  %v57 = vmul.f32 %v49, %v55
  %v58 = vmul.f32 %v50, %v55
  %v60 = vlaneseq
  %v61 = vshrl.u32 %v60, 7
  %v62 = vsub.s32 0, %v61
  %v63 = vrot.slane %v24, %v62
  %v65 = vadd.f32 %v57, %v63
  %v66 = vadd.f32 %v58, %v63
  %v67 = vpack.c.bf16 %v66, %v65
  %v68 = vld [vmem:[%s3] sm:$0xff]
  %v69 = vld [vmem:[%s3 + $0x8] sm:$0xf]
  %v70 = vld [vmem:[%s3 + $0xc] sm:$0xff]
  %v71 = vld [vmem:[%s3 + $0x14] sm:$0xf]
  %v72 = vld [vmem:[%s3 + $0x18] sm:$0xff]
  %v73 = vld [vmem:[%s3 + $0x20] sm:$0xf]
  %v74 = vld [vmem:[%s3 + $0x24] sm:$0xff]
  %v75 = vld [vmem:[%s3 + $0x2c] sm:$0xf]
  %v76 = vld [vmem:[%s3 + $0x30] sm:$0xff]
  %v77 = vld [vmem:[%s3 + $0x38] sm:$0xf]
  %v78 = vld [vmem:[%s3 + $0x3c] sm:$0xff]
  %v79 = vld [vmem:[%s3 + $0x44] sm:$0xf]
  %v80 = vld [vmem:[%s3 + $0x48] sm:$0xff]
  %v81 = vld [vmem:[%s3 + $0x50] sm:$0xf]
  %v82 = vld [vmem:[%s3 + $0x54] sm:$0xff]
  %v83 = vld [vmem:[%s3 + $0x5c] sm:$0xf]
  %v84 = vld [vmem:[%s3 + $0x60] sm:$0xff]
  %v85 = vld [vmem:[%s3 + $0x68] sm:$0xf]
  %v86 = vld [vmem:[%s3 + $0x6c] sm:$0xff]
  %v87 = vld [vmem:[%s3 + $0x74] sm:$0xf]
  %v88 = vld [vmem:[%s3 + $0x78] sm:$0xff]
  %v89 = vld [vmem:[%s3 + $0x80] sm:$0xf]
  %v90 = vld [vmem:[%s3 + $0x84] sm:$0xff]
  %v91 = vld [vmem:[%s3 + $0x8c] sm:$0xf]
  %v92 = vld [vmem:[%s3 + $0x90] sm:$0xff]
  %v93 = vld [vmem:[%s3 + $0x98] sm:$0xf]
  %v94 = vld [vmem:[%s3 + $0x9c] sm:$0xff]
  %v95 = vld [vmem:[%s3 + $0xa4] sm:$0xf]
  %v96 = vld [vmem:[%s3 + $0xa8] sm:$0xff]
  %v97 = vld [vmem:[%s3 + $0xb0] sm:$0xf]
  %v98 = vld [vmem:[%s3 + $0xb4] sm:$0xff]
  %v99 = vld [vmem:[%s3 + $0xbc] sm:$0xf]
  %v100 = vld [vmem:[%s4] sm:$0x7]
  %v102 = vlaneseq
  %v103 = vshrl.u32 %v102, 7
  %v104 = vsub.s32 0, %v103
  %v105 = vrot.slane %v100, %v104
  %v106 = vlaneseq
  %v107 = vshrl.u32 %v106, 7
  %v108 = vsub.s32 1, %v107
  %v109 = vrot.slane %v100, %v108
  %v110 = vlaneseq
  %v111 = vshrl.u32 %v110, 7
  %v112 = vsub.s32 2, %v111
  %v113 = vrot.slane %v100, %v112
  %v149 = vunpack.c.l.b16 %v68
  %v150 = vunpack.c.h.b16 %v68
  %v151 = vunpack.c.l.b16 %v69
  %v152 = vunpack.c.l.b16 %v70
  %v153 = vunpack.c.h.b16 %v70
  %v154 = vunpack.c.l.b16 %v71
  %v155 = vunpack.c.l.b16 %v72
  %v156 = vunpack.c.h.b16 %v72
  %v157 = vunpack.c.l.b16 %v73
  %v158 = vunpack.c.l.b16 %v74
  %v159 = vunpack.c.h.b16 %v74
  %v160 = vunpack.c.l.b16 %v75
  %v161 = vunpack.c.l.b16 %v76
  %v162 = vunpack.c.h.b16 %v76
  %v163 = vunpack.c.l.b16 %v77
  %v164 = vunpack.c.l.b16 %v78
  %v165 = vunpack.c.h.b16 %v78
  %v166 = vunpack.c.l.b16 %v79
  %v167 = vunpack.c.l.b16 %v80
  %v168 = vunpack.c.h.b16 %v80
  %v169 = vunpack.c.l.b16 %v81
  %v170 = vunpack.c.l.b16 %v82
  %v171 = vunpack.c.h.b16 %v82
  %v172 = vunpack.c.l.b16 %v83
  %v173 = vunpack.c.l.b16 %v84
  %v174 = vunpack.c.h.b16 %v84
  %v175 = vunpack.c.l.b16 %v85
  %v176 = vunpack.c.l.b16 %v86
  %v177 = vunpack.c.h.b16 %v86
  %v178 = vunpack.c.l.b16 %v87
  %v179 = vunpack.c.l.b16 %v88
  %v180 = vunpack.c.h.b16 %v88
  %v181 = vunpack.c.l.b16 %v89
  %v182 = vunpack.c.l.b16 %v90
  %v183 = vunpack.c.h.b16 %v90
  %v184 = vunpack.c.l.b16 %v91
  %v185 = vunpack.c.l.b16 %v92
  %v186 = vunpack.c.h.b16 %v92
  %v187 = vunpack.c.l.b16 %v93
  %v188 = vunpack.c.l.b16 %v94
  %v189 = vunpack.c.h.b16 %v94
  %v190 = vunpack.c.l.b16 %v95
  %v191 = vunpack.c.l.b16 %v96
  %v192 = vunpack.c.h.b16 %v96
  %v193 = vunpack.c.l.b16 %v97
  %v194 = vunpack.c.l.b16 %v98
  %v195 = vunpack.c.h.b16 %v98
  %v196 = vunpack.c.l.b16 %v99
  %v197 = vpack.c.b16 %v152, %v149
  %v198 = vpack.c.b16 %v153, %v150
  %v199 = vpack.c.b16 %v154, %v151
  %v200 = vpack.c.b16 %v158, %v155
  %v201 = vpack.c.b16 %v159, %v156
  %v202 = vpack.c.b16 %v160, %v157
  %v203 = vpack.c.b16 %v164, %v161
  %v204 = vpack.c.b16 %v165, %v162
  %v205 = vpack.c.b16 %v166, %v163
  %v206 = vpack.c.b16 %v170, %v167
  %v207 = vpack.c.b16 %v171, %v168
  %v208 = vpack.c.b16 %v172, %v169
  %v209 = vpack.c.b16 %v176, %v173
  %v210 = vpack.c.b16 %v177, %v174
  %v211 = vpack.c.b16 %v178, %v175
  %v212 = vpack.c.b16 %v182, %v179
  %v213 = vpack.c.b16 %v183, %v180
  %v214 = vpack.c.b16 %v184, %v181
  %v215 = vpack.c.b16 %v188, %v185
  %v216 = vpack.c.b16 %v189, %v186
  %v217 = vpack.c.b16 %v190, %v187
  %v218 = vpack.c.b16 %v194, %v191
  %v219 = vpack.c.b16 %v195, %v192
  %v220 = vpack.c.b16 %v196, %v193
  %245 = vmatprep.subr.bf16.mxu0 %v219
  %246 = vmatpush1.bf16.msra.mxu0 %v218
  %247 = vmatprep.subr.bf16.mxu0 %v216
  %248 = vmatpush1.bf16.msra.mxu0 %v215
  %249 = vmatprep.subr.bf16.mxu0 %v213
  %250 = vmatpush1.bf16.msra.mxu0 %v212
  %251 = vmatprep.subr.bf16.mxu0 %v210
  %252 = vmatpush1.bf16.msra.mxu0 %v209
  %253 = vmatprep.subr.bf16.mxu0 %v207
  %254 = vmatpush1.bf16.msra.mxu0 %v206
  %255 = vmatprep.subr.bf16.mxu0 %v204
  %256 = vmatpush1.bf16.msra.mxu0 %v203
  %257 = vmatprep.subr.bf16.mxu0 %v201
  %258 = vmatpush1.bf16.msra.mxu0 %v200
  %259 = vmatprep.subr.bf16.mxu0 %v198
  %260 = vmatpush1.bf16.msra.mxu0 %v197
  %261 = vmatprep.subr.bf16.mxu0 0
  %262 = vmatpush2.bf16.msra.mxu0 0
  %263 = vmatprep.subr.bf16.mxu0 0
  %264 = vmatpush2.bf16.msra.mxu0 0
  %265 = vmatprep.subr.bf16.mxu0 0
  %266 = vmatpush2.bf16.msra.mxu0 0
  %267 = vmatprep.subr.bf16.mxu0 0
  %268 = vmatpush2.bf16.msra.mxu0 0
  %269 = vmatprep.subr.bf16.mxu0 0
  %270 = vmatpush2.bf16.msra.mxu0 0
  %271 = vmatprep.subr.bf16.mxu0 0
  %272 = vmatpush2.bf16.msra.mxu0 0
  %273 = vmatprep.subr.bf16.mxu0 0
  %274 = vmatpush2.bf16.msra.mxu0 0
  %275 = vmatprep.subr.bf16.mxu0 0
  %276 = vmatpush2.bf16.msra.mxu0 0
  %277 = vmatprep.mubr.bf16.mxu0 0
  %278 = vmatmul.mubr.bf16.gmra.mxu0 %v67
  %v279 = vpop.f32.mrf.mxu0
  %v280 = vadd.f32 %v105, %v279
  %v281 = vpop.f32.mrf.mxu0
  %v282 = vadd.f32 %v109, %v281
  %v283 = vpop.f32.mrf.mxu0
  %v284 = vadd.f32 %v105, %v283
  %v285 = vpop.f32.mrf.mxu0
  %v286 = vadd.f32 %v109, %v285
  %287 = vdwg.mxu0
  %288 = vmatprep.subr.bf16.mxu0 0
  %289 = vmatpush1.bf16.msra.mxu0 %v220
  %290 = vmatprep.subr.bf16.mxu0 0
  %291 = vmatpush1.bf16.msra.mxu0 %v217
  %292 = vmatprep.subr.bf16.mxu0 0
  %293 = vmatpush1.bf16.msra.mxu0 %v214
  %294 = vmatprep.subr.bf16.mxu0 0
  %295 = vmatpush1.bf16.msra.mxu0 %v211
  %296 = vmatprep.subr.bf16.mxu0 0
  %297 = vmatpush1.bf16.msra.mxu0 %v208
  %298 = vmatprep.subr.bf16.mxu0 0
  %299 = vmatpush1.bf16.msra.mxu0 %v205
  %300 = vmatprep.subr.bf16.mxu0 0
  %301 = vmatpush1.bf16.msra.mxu0 %v202
  %302 = vmatprep.subr.bf16.mxu0 0
  %303 = vmatpush1.bf16.msra.mxu0 %v199
  %304 = vmatprep.subr.bf16.mxu0 0
  %305 = vmatpush2.bf16.msra.mxu0 0
  %306 = vmatprep.subr.bf16.mxu0 0
  %307 = vmatpush2.bf16.msra.mxu0 0
  %308 = vmatprep.subr.bf16.mxu0 0
  %309 = vmatpush2.bf16.msra.mxu0 0
  %310 = vmatprep.subr.bf16.mxu0 0
  %311 = vmatpush2.bf16.msra.mxu0 0
  %312 = vmatprep.subr.bf16.mxu0 0
  %313 = vmatpush2.bf16.msra.mxu0 0
  %314 = vmatprep.subr.bf16.mxu0 0
  %315 = vmatpush2.bf16.msra.mxu0 0
  %316 = vmatprep.subr.bf16.mxu0 0
  %317 = vmatpush2.bf16.msra.mxu0 0
  %318 = vmatprep.subr.bf16.mxu0 0
  %319 = vmatpush2.bf16.msra.mxu0 0
  %320 = vmatprep.mubr.bf16.mxu0 0
  %321 = vmatmul.mubr.bf16.gmra.mxu0 %v67
  %v322 = vpop.f32.mrf.mxu0
  %v323 = vadd.f32 %v113, %v322
  %v324 = vpop.f32.mrf.mxu0
  %v325 = vpop.f32.mrf.mxu0
  %v326 = vadd.f32 %v113, %v325
  %v327 = vpop.f32.mrf.mxu0
  %328 = vdwg.mxu0
  %v329 = vpack.c.bf16 %v284, %v280
  %v330 = vpack.c.bf16 %v286, %v282
  %v331 = vpack.c.bf16 %v326, %v323
  %v335 = vunpack.c.l.b16 %v329
  %v336 = vunpack.c.l.b16 %v330
  %v337 = vunpack.c.l.b16 %v331
  %v338 = vunpack.c.h.b16 %v329
  %v339 = vunpack.c.h.b16 %v330
  %v340 = vunpack.c.h.b16 %v331
  %v341 = vpack.c.b16 %v336, %v335
  %v342 = vpack.c.b16 %v337, %v337
  %v343 = vpack.c.b16 %v339, %v338
  %v344 = vpack.c.b16 %v340, %v340
  %349 = vst [vmem:[%s5] sm:$0xff] %v341
  %350 = vst [vmem:[%s5 + $0x8] sm:$0xf] %v342
  %351 = vst [vmem:[%s5 + $0xc] sm:$0x11] %v343
  %352 = vst [vmem:[%s5 + $0x14] sm:$0x1] %v344
  // Predicated region
  $region22: #{dino_vit_forward.13} parent=0 // pred_check
    _
  $region23: #{dino_vit_forward.13} parent=0 // pred_check_branch
    %354 = sbr.rel (0) target = $region25
  $region24: #{dino_vit_forward.13} parent=0 // pred_region
    _
  $region25: #{dino_vit_forward.13} parent=0 // pred_fallthru
    _
  // Predicated region
  $region26: #{dino_vit_forward.13} parent=0 // pred_check
    _
  $region27: #{dino_vit_forward.13} parent=0 // pred_check_branch
    %356 = sbr.rel (0) target = $region29
  $region28: #{dino_vit_forward.13} parent=0 // pred_region
    _
  $region29: #{dino_vit_forward.13} parent=0 // pred_fallthru
    _

// kernel: dino_vit_forward.12
$region0: #{dino_vit_forward.12}
  #allocation0 [shape = 'u32[]', space=smem, size = 0x4, offset = 0x4, fixed_abs, tag = 'smem constant byte address 0x4 - core index']
  #allocation1 [shape = 'u32[144,128]{1,0:T(1,128)}', space=vmem, size = 0x12000, scoped, tag = 'internal scratch']
  %s0 = inlined_call_operand.vmem [shape: bf16[8,768], index: 0, kind: input, shape index: {}]
  %s1 = inlined_call_operand.vmem [shape: bf16[768,128], index: 1, kind: input, shape index: {}]
  %s2 = inlined_call_operand.vmem [shape: f32[1,128], index: 2, kind: input, shape index: {}]
  %s3 = inlined_call_operand.vmem [shape: f32[8,128], index: 3, kind: output, shape index: {}]
  %s4 = sld [smem:[#allocation0]]
  $region22: #{dino_vit_forward.12} parent=0
    _
  %s6 = ssub.s32 1, %s4
  %s7 = scalar_select 0, %s6, %s4
  // Predicated region
  $region2: #{dino_vit_forward.12} parent=0 // pred_check
    _
  $region3: #{dino_vit_forward.12} parent=0 // pred_check_branch
    %9 = sbr.rel (0) target = $region5
  $region4: #{dino_vit_forward.12} parent=0 // pred_region
    _
  $region5: #{dino_vit_forward.12} parent=0 // pred_fallthru
    _
  // Predicated region
  $region6: #{dino_vit_forward.12} parent=0 // pred_check
    _
  $region7: #{dino_vit_forward.12} parent=0 // pred_check_branch
    %11 = sbr.rel (0) target = $region9
  $region8: #{dino_vit_forward.12} parent=0 // pred_region
    _
  $region9: #{dino_vit_forward.12} parent=0 // pred_fallthru
    _
  // Predicated region
  $region10: #{dino_vit_forward.12} parent=0 // pred_check
    _
  $region11: #{dino_vit_forward.12} parent=0 // pred_check_branch
    %13 = sbr.rel (0) target = $region13
  $region12: #{dino_vit_forward.12} parent=0 // pred_region
    _
  $region13: #{dino_vit_forward.12} parent=0 // pred_fallthru
    _
  %v15 = vld [vmem:[%s0] sm:$0xff]
  %v16 = vld [vmem:[%s0 + $0x8] sm:$0xff]
  %v17 = vld [vmem:[%s0 + $0x10] sm:$0xff]
  %v18 = vld [vmem:[%s1] sm:$0xf]
  %v19 = vld [vmem:[%s1 + $0x4] sm:$0xf]
  %v20 = vld [vmem:[%s1 + $0x8] sm:$0xf]
  %v21 = vld [vmem:[%s1 + $0xc] sm:$0xf]
  %v22 = vld [vmem:[%s1 + $0x10] sm:$0xf]
  %v23 = vld [vmem:[%s1 + $0x14] sm:$0xf]
  %v24 = vld [vmem:[%s1 + $0x18] sm:$0xf]
  %v25 = vld [vmem:[%s1 + $0x1c] sm:$0xf]
  %v26 = vld [vmem:[%s1 + $0x20] sm:$0xf]
  %v27 = vld [vmem:[%s1 + $0x24] sm:$0xf]
  %v28 = vld [vmem:[%s1 + $0x28] sm:$0xf]
  %v29 = vld [vmem:[%s1 + $0x2c] sm:$0xf]
  %v30 = vld [vmem:[%s1 + $0x30] sm:$0xf]
  %v31 = vld [vmem:[%s1 + $0x34] sm:$0xf]
  %v32 = vld [vmem:[%s1 + $0x38] sm:$0xf]
  %v33 = vld [vmem:[%s1 + $0x3c] sm:$0xf]
  %v34 = vld [vmem:[%s1 + $0x40] sm:$0xf]
  %v35 = vld [vmem:[%s1 + $0x44] sm:$0xf]
  %v36 = vld [vmem:[%s1 + $0x48] sm:$0xf]
  %v37 = vld [vmem:[%s1 + $0x4c] sm:$0xf]
  %v38 = vld [vmem:[%s1 + $0x50] sm:$0xf]
  %v39 = vld [vmem:[%s1 + $0x54] sm:$0xf]
  %v40 = vld [vmem:[%s1 + $0x58] sm:$0xf]
  %v41 = vld [vmem:[%s1 + $0x5c] sm:$0xf]
  %v42 = vld [vmem:[%s1 + $0x60] sm:$0xf]
  %v43 = vld [vmem:[%s1 + $0x64] sm:$0xf]
  %v44 = vld [vmem:[%s1 + $0x68] sm:$0xf]
  %v45 = vld [vmem:[%s1 + $0x6c] sm:$0xf]
  %v46 = vld [vmem:[%s1 + $0x70] sm:$0xf]
  %v47 = vld [vmem:[%s1 + $0x74] sm:$0xf]
  %v48 = vld [vmem:[%s1 + $0x78] sm:$0xf]
  %v49 = vld [vmem:[%s1 + $0x7c] sm:$0xf]
  %v50 = vld [vmem:[%s1 + $0x80] sm:$0xf]
  %v51 = vld [vmem:[%s1 + $0x84] sm:$0xf]
  %v52 = vld [vmem:[%s1 + $0x88] sm:$0xf]
  %v53 = vld [vmem:[%s1 + $0x8c] sm:$0xf]
  %v54 = vld [vmem:[%s1 + $0x90] sm:$0xf]
  %v55 = vld [vmem:[%s1 + $0x94] sm:$0xf]
  %v56 = vld [vmem:[%s1 + $0x98] sm:$0xf]
  %v57 = vld [vmem:[%s1 + $0x9c] sm:$0xf]
  %v58 = vld [vmem:[%s1 + $0xa0] sm:$0xf]
  %v59 = vld [vmem:[%s1 + $0xa4] sm:$0xf]
  %v60 = vld [vmem:[%s1 + $0xa8] sm:$0xf]
  %v61 = vld [vmem:[%s1 + $0xac] sm:$0xf]
  %v62 = vld [vmem:[%s1 + $0xb0] sm:$0xf]
  %v63 = vld [vmem:[%s1 + $0xb4] sm:$0xf]
  %v64 = vld [vmem:[%s1 + $0xb8] sm:$0xf]
  %v65 = vld [vmem:[%s1 + $0xbc] sm:$0xf]
  %v66 = vld [vmem:[%s1 + $0xc0] sm:$0xf]
  %v67 = vld [vmem:[%s1 + $0xc4] sm:$0xf]
  %v68 = vld [vmem:[%s1 + $0xc8] sm:$0xf]
  %v69 = vld [vmem:[%s1 + $0xcc] sm:$0xf]
  %v70 = vld [vmem:[%s1 + $0xd0] sm:$0xf]
  %v71 = vld [vmem:[%s1 + $0xd4] sm:$0xf]
  %v72 = vld [vmem:[%s1 + $0xd8] sm:$0xf]
  %v73 = vld [vmem:[%s1 + $0xdc] sm:$0xf]
  %v74 = vld [vmem:[%s1 + $0xe0] sm:$0xf]
  %v75 = vld [vmem:[%s1 + $0xe4] sm:$0xf]
  %v76 = vld [vmem:[%s1 + $0xe8] sm:$0xf]
  %v77 = vld [vmem:[%s1 + $0xec] sm:$0xf]
  %v78 = vld [vmem:[%s1 + $0xf0] sm:$0xf]
  %v79 = vld [vmem:[%s1 + $0xf4] sm:$0xf]
  %v80 = vld [vmem:[%s1 + $0xf8] sm:$0xf]
  %v81 = vld [vmem:[%s1 + $0xfc] sm:$0xf]
  %v82 = vld [vmem:[%s1 + $0x100] sm:$0xf]
  %v83 = vld [vmem:[%s1 + $0x104] sm:$0xf]
  %v84 = vld [vmem:[%s1 + $0x108] sm:$0xf]
  %v85 = vld [vmem:[%s1 + $0x10c] sm:$0xf]
  %v86 = vld [vmem:[%s1 + $0x110] sm:$0xf]
  %v87 = vld [vmem:[%s1 + $0x114] sm:$0xf]
  %v88 = vld [vmem:[%s1 + $0x118] sm:$0xf]
  %v89 = vld [vmem:[%s1 + $0x11c] sm:$0xf]
  %v90 = vld [vmem:[%s1 + $0x120] sm:$0xf]
  %v91 = vld [vmem:[%s1 + $0x124] sm:$0xf]
  %v92 = vld [vmem:[%s1 + $0x128] sm:$0xf]
  %v93 = vld [vmem:[%s1 + $0x12c] sm:$0xf]
  %v94 = vld [vmem:[%s1 + $0x130] sm:$0xf]
  %v95 = vld [vmem:[%s1 + $0x134] sm:$0xf]
  %v96 = vld [vmem:[%s1 + $0x138] sm:$0xf]
  %v97 = vld [vmem:[%s1 + $0x13c] sm:$0xf]
  %v98 = vld [vmem:[%s1 + $0x140] sm:$0xf]
  %v99 = vld [vmem:[%s1 + $0x144] sm:$0xf]
  %v100 = vld [vmem:[%s1 + $0x148] sm:$0xf]
  %v101 = vld [vmem:[%s1 + $0x14c] sm:$0xf]
  %v102 = vld [vmem:[%s1 + $0x150] sm:$0xf]
  %v103 = vld [vmem:[%s1 + $0x154] sm:$0xf]
  %v104 = vld [vmem:[%s1 + $0x158] sm:$0xf]
  %v105 = vld [vmem:[%s1 + $0x15c] sm:$0xf]
  %v106 = vld [vmem:[%s1 + $0x160] sm:$0xf]
  %v107 = vld [vmem:[%s1 + $0x164] sm:$0xf]
  %v108 = vld [vmem:[%s1 + $0x168] sm:$0xf]
  %v109 = vld [vmem:[%s1 + $0x16c] sm:$0xf]
  %v110 = vld [vmem:[%s1 + $0x170] sm:$0xf]
  %v111 = vld [vmem:[%s1 + $0x174] sm:$0xf]
  %v112 = vld [vmem:[%s1 + $0x178] sm:$0xf]
  %v113 = vld [vmem:[%s1 + $0x17c] sm:$0xf]
  %v114 = vld [vmem:[%s2] sm:$0x1]
  %v116 = vlaneseq
  %v117 = vshrl.u32 %v116, 7
  %v118 = vsub.s32 0, %v117
  %v119 = vrot.slane %v114, %v118
  %v124 = vunpack.c.l.b16 %v15
  %v125 = vunpack.c.h.b16 %v15
  %v126 = vunpack.c.l.b16 %v16
  %v127 = vunpack.c.h.b16 %v16
  %v128 = vunpack.c.l.b16 %v17
  %v129 = vunpack.c.h.b16 %v17
  %v130 = vpack.c.b16 %v124, %v124
  %v131 = vpack.c.b16 %v125, %v125
  %v132 = vpack.c.b16 %v126, %v126
  %v133 = vpack.c.b16 %v127, %v127
  %v134 = vpack.c.b16 %v128, %v128
  %v135 = vpack.c.b16 %v129, %v129
  %v238 = vunpack.c.l.b16 %v18
  %v239 = vunpack.c.l.b16 %v19
  %v240 = vunpack.c.l.b16 %v20
  %v241 = vunpack.c.l.b16 %v21
  %v242 = vunpack.c.l.b16 %v22
  %v243 = vunpack.c.l.b16 %v23
  %v244 = vunpack.c.l.b16 %v24
  %v245 = vunpack.c.l.b16 %v25
  %v246 = vunpack.c.l.b16 %v26
  %v247 = vunpack.c.l.b16 %v27
  %v248 = vunpack.c.l.b16 %v28
  %v249 = vunpack.c.l.b16 %v29
  %v250 = vunpack.c.l.b16 %v30
  %v251 = vunpack.c.l.b16 %v31
  %v252 = vunpack.c.l.b16 %v32
  %v253 = vunpack.c.l.b16 %v33
  %v254 = vunpack.c.l.b16 %v34
  %v255 = vunpack.c.l.b16 %v35
  %v256 = vunpack.c.l.b16 %v36
  %v257 = vunpack.c.l.b16 %v37
  %v258 = vunpack.c.l.b16 %v38
  %v259 = vunpack.c.l.b16 %v39
  %v260 = vunpack.c.l.b16 %v40
  %v261 = vunpack.c.l.b16 %v41
  %v262 = vunpack.c.l.b16 %v42
  %v263 = vunpack.c.l.b16 %v43
  %v264 = vunpack.c.l.b16 %v44
  %v265 = vunpack.c.l.b16 %v45
  %v266 = vunpack.c.l.b16 %v46
  %v267 = vunpack.c.l.b16 %v47
  %v268 = vunpack.c.l.b16 %v48
  %v269 = vunpack.c.l.b16 %v49
  %v270 = vunpack.c.l.b16 %v50
  %v271 = vunpack.c.l.b16 %v51
  %v272 = vunpack.c.l.b16 %v52
  %v273 = vunpack.c.l.b16 %v53
  %v274 = vunpack.c.l.b16 %v54
  %v275 = vunpack.c.l.b16 %v55
  %v276 = vunpack.c.l.b16 %v56
  %v277 = vunpack.c.l.b16 %v57
  %v278 = vunpack.c.l.b16 %v58
  %v279 = vunpack.c.l.b16 %v59
  %v280 = vunpack.c.l.b16 %v60
  %v281 = vunpack.c.l.b16 %v61
  %v282 = vunpack.c.l.b16 %v62
  %v283 = vunpack.c.l.b16 %v63
  %v284 = vunpack.c.l.b16 %v64
  %v285 = vunpack.c.l.b16 %v65
  %v286 = vunpack.c.l.b16 %v66
  %v287 = vunpack.c.l.b16 %v67
  %v288 = vunpack.c.l.b16 %v68
  %v289 = vunpack.c.l.b16 %v69
  %v290 = vunpack.c.l.b16 %v70
  %v291 = vunpack.c.l.b16 %v71
  %v292 = vunpack.c.l.b16 %v72
  %v293 = vunpack.c.l.b16 %v73
  %v294 = vunpack.c.l.b16 %v74
  %v295 = vunpack.c.l.b16 %v75
  %v296 = vunpack.c.l.b16 %v76
  %v297 = vunpack.c.l.b16 %v77
  %v298 = vunpack.c.l.b16 %v78
  %v299 = vunpack.c.l.b16 %v79
  %v300 = vunpack.c.l.b16 %v80
  %v301 = vunpack.c.l.b16 %v81
  %v302 = vunpack.c.l.b16 %v82
  %v303 = vunpack.c.l.b16 %v83
  %v304 = vunpack.c.l.b16 %v84
  %v305 = vunpack.c.l.b16 %v85
  %v306 = vunpack.c.l.b16 %v86
  %v307 = vunpack.c.l.b16 %v87
  %v308 = vunpack.c.l.b16 %v88
  %v309 = vunpack.c.l.b16 %v89
  %v310 = vunpack.c.l.b16 %v90
  %v311 = vunpack.c.l.b16 %v91
  %v312 = vunpack.c.l.b16 %v92
  %v313 = vunpack.c.l.b16 %v93
  %v314 = vunpack.c.l.b16 %v94
  %v315 = vunpack.c.l.b16 %v95
  %v316 = vunpack.c.l.b16 %v96
  %v317 = vunpack.c.l.b16 %v97
  %v318 = vunpack.c.l.b16 %v98
  %v319 = vunpack.c.l.b16 %v99
  %v320 = vunpack.c.l.b16 %v100
  %v321 = vunpack.c.l.b16 %v101
  %v322 = vunpack.c.l.b16 %v102
  %v323 = vunpack.c.l.b16 %v103
  %v324 = vunpack.c.l.b16 %v104
  %v325 = vunpack.c.l.b16 %v105
  %v326 = vunpack.c.l.b16 %v106
  %v327 = vunpack.c.l.b16 %v107
  %v328 = vunpack.c.l.b16 %v108
  %v329 = vunpack.c.l.b16 %v109
  %v330 = vunpack.c.l.b16 %v110
  %v331 = vunpack.c.l.b16 %v111
  %v332 = vunpack.c.l.b16 %v112
  %v333 = vunpack.c.l.b16 %v113
  %v334 = vpack.c.b16 %v239, %v238
  %v335 = vpack.c.b16 %v241, %v240
  %v336 = vpack.c.b16 %v243, %v242
  %v337 = vpack.c.b16 %v245, %v244
  %v338 = vpack.c.b16 %v247, %v246
  %v339 = vpack.c.b16 %v249, %v248
  %v340 = vpack.c.b16 %v251, %v250
  %v341 = vpack.c.b16 %v253, %v252
  %v342 = vpack.c.b16 %v255, %v254
  %v343 = vpack.c.b16 %v257, %v256
  %v344 = vpack.c.b16 %v259, %v258
  %v345 = vpack.c.b16 %v261, %v260
  %v346 = vpack.c.b16 %v263, %v262
  %v347 = vpack.c.b16 %v265, %v264
  %v348 = vpack.c.b16 %v267, %v266
  %v349 = vpack.c.b16 %v269, %v268
  %v350 = vpack.c.b16 %v271, %v270
  %v351 = vpack.c.b16 %v273, %v272
  %v352 = vpack.c.b16 %v275, %v274
  %v353 = vpack.c.b16 %v277, %v276
  %v354 = vpack.c.b16 %v279, %v278
  %v355 = vpack.c.b16 %v281, %v280
  %v356 = vpack.c.b16 %v283, %v282
  %v357 = vpack.c.b16 %v285, %v284
  %v358 = vpack.c.b16 %v287, %v286
  %v359 = vpack.c.b16 %v289, %v288
  %v360 = vpack.c.b16 %v291, %v290
  %v361 = vpack.c.b16 %v293, %v292
  %v362 = vpack.c.b16 %v295, %v294
  %v363 = vpack.c.b16 %v297, %v296
  %v364 = vpack.c.b16 %v299, %v298
  %v365 = vpack.c.b16 %v301, %v300
  %v366 = vpack.c.b16 %v303, %v302
  %v367 = vpack.c.b16 %v305, %v304
  %v368 = vpack.c.b16 %v307, %v306
  %v369 = vpack.c.b16 %v309, %v308
  %v370 = vpack.c.b16 %v311, %v310
  %v371 = vpack.c.b16 %v313, %v312
  %v372 = vpack.c.b16 %v315, %v314
  %v373 = vpack.c.b16 %v317, %v316
  %v374 = vpack.c.b16 %v319, %v318
  %v375 = vpack.c.b16 %v321, %v320
  %v376 = vpack.c.b16 %v323, %v322
  %v377 = vpack.c.b16 %v325, %v324
  %v378 = vpack.c.b16 %v327, %v326
  %v379 = vpack.c.b16 %v329, %v328
  %v380 = vpack.c.b16 %v331, %v330
  %v381 = vpack.c.b16 %v333, %v332
  %430 = vmatprep.subr.bf16.mxu0 0
  %431 = vmatpush1.bf16.msra.mxu0 %v341
  %432 = vmatprep.subr.bf16.mxu0 0
  %433 = vmatpush1.bf16.msra.mxu0 %v340
  %434 = vmatprep.subr.bf16.mxu0 0
  %435 = vmatpush1.bf16.msra.mxu0 %v339
  %436 = vmatprep.subr.bf16.mxu0 0
  %437 = vmatpush1.bf16.msra.mxu0 %v338
  %438 = vmatprep.subr.bf16.mxu0 0
  %439 = vmatpush1.bf16.msra.mxu0 %v337
  %440 = vmatprep.subr.bf16.mxu0 0
  %441 = vmatpush1.bf16.msra.mxu0 %v336
  %442 = vmatprep.subr.bf16.mxu0 0
  %443 = vmatpush1.bf16.msra.mxu0 %v335
  %444 = vmatprep.subr.bf16.mxu0 0
  %445 = vmatpush1.bf16.msra.mxu0 %v334
  %446 = vmatprep.subr.bf16.mxu0 0
  %447 = vmatpush2.bf16.msra.mxu0 %v349
  %448 = vmatprep.subr.bf16.mxu0 0
  %449 = vmatpush2.bf16.msra.mxu0 %v348
  %450 = vmatprep.subr.bf16.mxu0 0
  %451 = vmatpush2.bf16.msra.mxu0 %v347
  %452 = vmatprep.subr.bf16.mxu0 0
  %453 = vmatpush2.bf16.msra.mxu0 %v346
  %454 = vmatprep.subr.bf16.mxu0 0
  %455 = vmatpush2.bf16.msra.mxu0 %v345
  %456 = vmatprep.subr.bf16.mxu0 0
  %457 = vmatpush2.bf16.msra.mxu0 %v344
  %458 = vmatprep.subr.bf16.mxu0 0
  %459 = vmatpush2.bf16.msra.mxu0 %v343
  %460 = vmatprep.subr.bf16.mxu0 0
  %461 = vmatpush2.bf16.msra.mxu0 %v342
  %462 = vmatprep.mubr.bf16.mxu0 %v131
  %463 = vmatmul.mubr.bf16.gmra.mxu0 %v130
  %v464 = vpop.f32.mrf.mxu0
  %v465 = vadd.f32 %v119, %v464
  %v466 = vpop.f32.mrf.mxu0
  %v467 = vpop.f32.mrf.mxu0
  %v468 = vpop.f32.mrf.mxu0
  %469 = vdwg.mxu0
  %470 = vmatprep.subr.bf16.mxu0 0
  %471 = vmatpush1.bf16.msra.mxu0 %v357
  %472 = vmatprep.subr.bf16.mxu0 0
  %473 = vmatpush1.bf16.msra.mxu0 %v356
  %474 = vmatprep.subr.bf16.mxu0 0
  %475 = vmatpush1.bf16.msra.mxu0 %v355
  %476 = vmatprep.subr.bf16.mxu0 0
  %477 = vmatpush1.bf16.msra.mxu0 %v354
  %478 = vmatprep.subr.bf16.mxu0 0
  %479 = vmatpush1.bf16.msra.mxu0 %v353
  %480 = vmatprep.subr.bf16.mxu0 0
  %481 = vmatpush1.bf16.msra.mxu0 %v352
  %482 = vmatprep.subr.bf16.mxu0 0
  %483 = vmatpush1.bf16.msra.mxu0 %v351
  %484 = vmatprep.subr.bf16.mxu0 0
  %485 = vmatpush1.bf16.msra.mxu0 %v350
  %486 = vmatprep.subr.bf16.mxu0 0
  %487 = vmatpush2.bf16.msra.mxu0 %v365
  %488 = vmatprep.subr.bf16.mxu0 0
  %489 = vmatpush2.bf16.msra.mxu0 %v364
  %490 = vmatprep.subr.bf16.mxu0 0
  %491 = vmatpush2.bf16.msra.mxu0 %v363
  %492 = vmatprep.subr.bf16.mxu0 0
  %493 = vmatpush2.bf16.msra.mxu0 %v362
  %494 = vmatprep.subr.bf16.mxu0 0
  %495 = vmatpush2.bf16.msra.mxu0 %v361
  %496 = vmatprep.subr.bf16.mxu0 0
  %497 = vmatpush2.bf16.msra.mxu0 %v360
  %498 = vmatprep.subr.bf16.mxu0 0
  %499 = vmatpush2.bf16.msra.mxu0 %v359
  %500 = vmatprep.subr.bf16.mxu0 0
  %501 = vmatpush2.bf16.msra.mxu0 %v358
  %502 = vmatprep.mubr.bf16.mxu0 %v133
  %503 = vmatmul.mubr.bf16.gmra.mxu0 %v132
  %v504 = vpop.f32.mrf.mxu0
  %v505 = vadd.f32 %v465, %v504
  %v506 = vpop.f32.mrf.mxu0
  %v507 = vpop.f32.mrf.mxu0
  %v508 = vpop.f32.mrf.mxu0
  %509 = vdwg.mxu0
  %510 = vmatprep.subr.bf16.mxu0 0
  %511 = vmatpush1.bf16.msra.mxu0 %v373
  %512 = vmatprep.subr.bf16.mxu0 0
  %513 = vmatpush1.bf16.msra.mxu0 %v372
  %514 = vmatprep.subr.bf16.mxu0 0
  %515 = vmatpush1.bf16.msra.mxu0 %v371
  %516 = vmatprep.subr.bf16.mxu0 0
  %517 = vmatpush1.bf16.msra.mxu0 %v370
  %518 = vmatprep.subr.bf16.mxu0 0
  %519 = vmatpush1.bf16.msra.mxu0 %v369
  %520 = vmatprep.subr.bf16.mxu0 0
  %521 = vmatpush1.bf16.msra.mxu0 %v368
  %522 = vmatprep.subr.bf16.mxu0 0
  %523 = vmatpush1.bf16.msra.mxu0 %v367
  %524 = vmatprep.subr.bf16.mxu0 0
  %525 = vmatpush1.bf16.msra.mxu0 %v366
  %526 = vmatprep.subr.bf16.mxu0 0
  %527 = vmatpush2.bf16.msra.mxu0 %v381
  %528 = vmatprep.subr.bf16.mxu0 0
  %529 = vmatpush2.bf16.msra.mxu0 %v380
  %530 = vmatprep.subr.bf16.mxu0 0
  %531 = vmatpush2.bf16.msra.mxu0 %v379
  %532 = vmatprep.subr.bf16.mxu0 0
  %533 = vmatpush2.bf16.msra.mxu0 %v378
  %534 = vmatprep.subr.bf16.mxu0 0
  %535 = vmatpush2.bf16.msra.mxu0 %v377
  %536 = vmatprep.subr.bf16.mxu0 0
  %537 = vmatpush2.bf16.msra.mxu0 %v376
  %538 = vmatprep.subr.bf16.mxu0 0
  %539 = vmatpush2.bf16.msra.mxu0 %v375
  %540 = vmatprep.subr.bf16.mxu0 0
  %541 = vmatpush2.bf16.msra.mxu0 %v374
  %542 = vmatprep.mubr.bf16.mxu0 %v135
  %543 = vmatmul.mubr.bf16.gmra.mxu0 %v134
  %v544 = vpop.f32.mrf.mxu0
  %v545 = vadd.f32 %v505, %v544
  %v546 = vpop.f32.mrf.mxu0
  %v547 = vpop.f32.mrf.mxu0
  %v548 = vpop.f32.mrf.mxu0
  %549 = vdwg.mxu0
  %550 = vst [vmem:[%s3] sm:$0xff] %v545
  // Predicated region
  $region14: #{dino_vit_forward.12} parent=0 // pred_check
    _
  $region15: #{dino_vit_forward.12} parent=0 // pred_check_branch
    %552 = sbr.rel (0) target = $region17
  $region16: #{dino_vit_forward.12} parent=0 // pred_region
    _
  $region17: #{dino_vit_forward.12} parent=0 // pred_fallthru
    _
  // Predicated region
  $region18: #{dino_vit_forward.12} parent=0 // pred_check
    _
  $region19: #{dino_vit_forward.12} parent=0 // pred_check_branch
    %554 = sbr.rel (0) target = $region21
  $region20: #{dino_vit_forward.12} parent=0 // pred_region
    _
  $region21: #{dino_vit_forward.12} parent=0 // pred_fallthru
    _

// kernel: dino_vit_forward.16
$region0: #{dino_vit_forward.16}
  #allocation0 [shape = 'u32[]', space=smem, size = 0x4, offset = 0x4, fixed_abs, tag = 'smem constant byte address 0x4 - core index']
  #allocation1 [shape = 'u32[144,128]{1,0:T(1,128)}', space=vmem, size = 0x12000, scoped, tag = 'internal scratch']
  %s0 = inlined_call_operand.vmem [shape: f32[10,128], index: 0, kind: input, shape index: {}]
  %s1 = inlined_call_operand.vmem [shape: f32[1,128], index: 1, kind: input, shape index: {}]
  %s2 = inlined_call_operand.vmem [shape: f32[1,128], index: 2, kind: input, shape index: {}]
  %s3 = inlined_call_operand.vmem [shape: bf16[128,512], index: 3, kind: input, shape index: {}]
  %s4 = inlined_call_operand.vmem [shape: f32[1,512], index: 4, kind: input, shape index: {}]
  %s5 = inlined_call_operand.vmem [shape: bf16[10,512], index: 5, kind: output, shape index: {}]
  %s6 = sld [smem:[#allocation0]]
  $region30: #{dino_vit_forward.16} parent=0
    _
  %s8 = ssub.s32 1, %s6
  %s9 = scalar_select 0, %s8, %s6
  // Predicated region
  $region2: #{dino_vit_forward.16} parent=0 // pred_check
    _
  $region3: #{dino_vit_forward.16} parent=0 // pred_check_branch
    %11 = sbr.rel (0) target = $region5
  $region4: #{dino_vit_forward.16} parent=0 // pred_region
    _
  $region5: #{dino_vit_forward.16} parent=0 // pred_fallthru
    _
  // Predicated region
  $region6: #{dino_vit_forward.16} parent=0 // pred_check
    _
  $region7: #{dino_vit_forward.16} parent=0 // pred_check_branch
    %13 = sbr.rel (0) target = $region9
  $region8: #{dino_vit_forward.16} parent=0 // pred_region
    _
  $region9: #{dino_vit_forward.16} parent=0 // pred_fallthru
    _
  // Predicated region
  $region10: #{dino_vit_forward.16} parent=0 // pred_check
    _
  $region11: #{dino_vit_forward.16} parent=0 // pred_check_branch
    %15 = sbr.rel (0) target = $region13
  $region12: #{dino_vit_forward.16} parent=0 // pred_region
    _
  $region13: #{dino_vit_forward.16} parent=0 // pred_fallthru
    _
  // Predicated region
  $region14: #{dino_vit_forward.16} parent=0 // pred_check
    _
  $region15: #{dino_vit_forward.16} parent=0 // pred_check_branch
    %17 = sbr.rel (0) target = $region17
  $region16: #{dino_vit_forward.16} parent=0 // pred_region
    _
  $region17: #{dino_vit_forward.16} parent=0 // pred_fallthru
    _
  // Predicated region
  $region18: #{dino_vit_forward.16} parent=0 // pred_check
    _
  $region19: #{dino_vit_forward.16} parent=0 // pred_check_branch
    %19 = sbr.rel (0) target = $region21
  $region20: #{dino_vit_forward.16} parent=0 // pred_region
    _
  $region21: #{dino_vit_forward.16} parent=0 // pred_fallthru
    _
  %v21 = vld [vmem:[%s0] sm:$0xff]
  %v22 = vld [vmem:[%s0 + $0x8] sm:$0x3]
  %v23 = vld [vmem:[%s1] sm:$0x1]
  %v24 = vld [vmem:[%s2] sm:$0x1]
  %25 = vadd.xlane.f32.xlu0 %v21
  %v26 = vpop.xlane.xlu0 %25
  %vm27 = vcmask 1041408
  %v28 = vsel %vm27, %v22, 0.0
  %29 = vadd.xlane.f32.xlu0 %v28
  %v30 = vpop.xlane.xlu0 %29
  %v31 = vrcp.pop 128.0
  %v32 = vmul.f32 %v26, %v31
  %v33 = vmul.f32 %v30, %v31
  %v34 = vsub.f32 %v21, %v32
  %v35 = vsub.f32 %v22, %v33
  %v36 = vmul.f32 %v34, %v34
  %v37 = vmul.f32 %v35, %v35
  %38 = vadd.xlane.f32.xlu0 %v36
  %v39 = vpop.xlane.xlu0 %38
  %v40 = vsel %vm27, %v37, 0.0
  %41 = vadd.xlane.f32.xlu0 %v40
  %v42 = vpop.xlane.xlu0 %41
  %v43 = vmul.f32 %v39, %v31
  %v44 = vmul.f32 %v42, %v31
  %v45 = vadd.f32 %v43, 1e-06
  %v46 = vadd.f32 %v44, 1e-06
  %v47 = vrsqrt.pop %v45
  %v48 = vrsqrt.pop %v46
  %v49 = vmul.f32 %v34, %v47
  %v50 = vmul.f32 %v35, %v48
  %v52 = vlaneseq
  %v53 = vshrl.u32 %v52, 7
  %v54 = vsub.s32 0, %v53
  %v55 = vrot.slane %v23, %v54
  %v57 = vmul.f32 %v49, %v55
  %v58 = vmul.f32 %v50, %v55
  %v60 = vlaneseq
  %v61 = vshrl.u32 %v60, 7
  %v62 = vsub.s32 0, %v61
  %v63 = vrot.slane %v24, %v62
  %v65 = vadd.f32 %v57, %v63
  %v66 = vadd.f32 %v58, %v63
  %v67 = vpack.c.bf16 %v66, %v65
  %v68 = vld [vmem:[%s3] sm:$0xff]
  %v69 = vld [vmem:[%s3 + $0x8] sm:$0xff]
  %v70 = vld [vmem:[%s3 + $0x10] sm:$0xff]
  %v71 = vld [vmem:[%s3 + $0x18] sm:$0xff]
  %v72 = vld [vmem:[%s3 + $0x20] sm:$0xff]
  %v73 = vld [vmem:[%s3 + $0x28] sm:$0xff]
  %v74 = vld [vmem:[%s3 + $0x30] sm:$0xff]
  %v75 = vld [vmem:[%s3 + $0x38] sm:$0xff]
  %v76 = vld [vmem:[%s3 + $0x40] sm:$0xff]
  %v77 = vld [vmem:[%s3 + $0x48] sm:$0xff]
  %v78 = vld [vmem:[%s3 + $0x50] sm:$0xff]
  %v79 = vld [vmem:[%s3 + $0x58] sm:$0xff]
  %v80 = vld [vmem:[%s3 + $0x60] sm:$0xff]
  %v81 = vld [vmem:[%s3 + $0x68] sm:$0xff]
  %v82 = vld [vmem:[%s3 + $0x70] sm:$0xff]
  %v83 = vld [vmem:[%s3 + $0x78] sm:$0xff]
  %v84 = vld [vmem:[%s3 + $0x80] sm:$0xff]
  %v85 = vld [vmem:[%s3 + $0x88] sm:$0xff]
  %v86 = vld [vmem:[%s3 + $0x90] sm:$0xff]
  %v87 = vld [vmem:[%s3 + $0x98] sm:$0xff]
  %v88 = vld [vmem:[%s3 + $0xa0] sm:$0xff]
  %v89 = vld [vmem:[%s3 + $0xa8] sm:$0xff]
  %v90 = vld [vmem:[%s3 + $0xb0] sm:$0xff]
  %v91 = vld [vmem:[%s3 + $0xb8] sm:$0xff]
  %v92 = vld [vmem:[%s3 + $0xc0] sm:$0xff]
  %v93 = vld [vmem:[%s3 + $0xc8] sm:$0xff]
  %v94 = vld [vmem:[%s3 + $0xd0] sm:$0xff]
  %v95 = vld [vmem:[%s3 + $0xd8] sm:$0xff]
  %v96 = vld [vmem:[%s3 + $0xe0] sm:$0xff]
  %v97 = vld [vmem:[%s3 + $0xe8] sm:$0xff]
  %v98 = vld [vmem:[%s3 + $0xf0] sm:$0xff]
  %v99 = vld [vmem:[%s3 + $0xf8] sm:$0xff]
  %v100 = vld [vmem:[%s4] sm:$0xf]
  %v102 = vlaneseq
  %v103 = vshrl.u32 %v102, 7
  %v104 = vsub.s32 0, %v103
  %v105 = vrot.slane %v100, %v104
  %v106 = vlaneseq
  %v107 = vshrl.u32 %v106, 7
  %v108 = vsub.s32 1, %v107
  %v109 = vrot.slane %v100, %v108
  %v110 = vlaneseq
  %v111 = vshrl.u32 %v110, 7
  %v112 = vsub.s32 2, %v111
  %v113 = vrot.slane %v100, %v112
  %v114 = vlaneseq
  %v115 = vshrl.u32 %v114, 7
  %v116 = vsub.s32 3, %v115
  %v117 = vrot.slane %v100, %v116
  %v154 = vunpack.c.l.b16 %v68
  %v155 = vunpack.c.h.b16 %v68
  %v156 = vunpack.c.l.b16 %v69
  %v157 = vunpack.c.h.b16 %v69
  %v158 = vunpack.c.l.b16 %v70
  %v159 = vunpack.c.h.b16 %v70
  %v160 = vunpack.c.l.b16 %v71
  %v161 = vunpack.c.h.b16 %v71
  %v162 = vunpack.c.l.b16 %v72
  %v163 = vunpack.c.h.b16 %v72
  %v164 = vunpack.c.l.b16 %v73
  %v165 = vunpack.c.h.b16 %v73
  %v166 = vunpack.c.l.b16 %v74
  %v167 = vunpack.c.h.b16 %v74
  %v168 = vunpack.c.l.b16 %v75
  %v169 = vunpack.c.h.b16 %v75
  %v170 = vunpack.c.l.b16 %v76
  %v171 = vunpack.c.h.b16 %v76
  %v172 = vunpack.c.l.b16 %v77
  %v173 = vunpack.c.h.b16 %v77
  %v174 = vunpack.c.l.b16 %v78
  %v175 = vunpack.c.h.b16 %v78
  %v176 = vunpack.c.l.b16 %v79
  %v177 = vunpack.c.h.b16 %v79
  %v178 = vunpack.c.l.b16 %v80
  %v179 = vunpack.c.h.b16 %v80
  %v180 = vunpack.c.l.b16 %v81
  %v181 = vunpack.c.h.b16 %v81
  %v182 = vunpack.c.l.b16 %v82
  %v183 = vunpack.c.h.b16 %v82
  %v184 = vunpack.c.l.b16 %v83
  %v185 = vunpack.c.h.b16 %v83
  %v186 = vunpack.c.l.b16 %v84
  %v187 = vunpack.c.h.b16 %v84
  %v188 = vunpack.c.l.b16 %v85
  %v189 = vunpack.c.h.b16 %v85
  %v190 = vunpack.c.l.b16 %v86
  %v191 = vunpack.c.h.b16 %v86
  %v192 = vunpack.c.l.b16 %v87
  %v193 = vunpack.c.h.b16 %v87
  %v194 = vunpack.c.l.b16 %v88
  %v195 = vunpack.c.h.b16 %v88
  %v196 = vunpack.c.l.b16 %v89
  %v197 = vunpack.c.h.b16 %v89
  %v198 = vunpack.c.l.b16 %v90
  %v199 = vunpack.c.h.b16 %v90
  %v200 = vunpack.c.l.b16 %v91
  %v201 = vunpack.c.h.b16 %v91
  %v202 = vunpack.c.l.b16 %v92
  %v203 = vunpack.c.h.b16 %v92
  %v204 = vunpack.c.l.b16 %v93
  %v205 = vunpack.c.h.b16 %v93
  %v206 = vunpack.c.l.b16 %v94
  %v207 = vunpack.c.h.b16 %v94
  %v208 = vunpack.c.l.b16 %v95
  %v209 = vunpack.c.h.b16 %v95
  %v210 = vunpack.c.l.b16 %v96
  %v211 = vunpack.c.h.b16 %v96
  %v212 = vunpack.c.l.b16 %v97
  %v213 = vunpack.c.h.b16 %v97
  %v214 = vunpack.c.l.b16 %v98
  %v215 = vunpack.c.h.b16 %v98
  %v216 = vunpack.c.l.b16 %v99
  %v217 = vunpack.c.h.b16 %v99
  %v218 = vpack.c.b16 %v158, %v154
  %v219 = vpack.c.b16 %v159, %v155
  %v220 = vpack.c.b16 %v160, %v156
  %v221 = vpack.c.b16 %v161, %v157
  %v222 = vpack.c.b16 %v166, %v162
  %v223 = vpack.c.b16 %v167, %v163
  %v224 = vpack.c.b16 %v168, %v164
  %v225 = vpack.c.b16 %v169, %v165
  %v226 = vpack.c.b16 %v174, %v170
  %v227 = vpack.c.b16 %v175, %v171
  %v228 = vpack.c.b16 %v176, %v172
  %v229 = vpack.c.b16 %v177, %v173
  %v230 = vpack.c.b16 %v182, %v178
  %v231 = vpack.c.b16 %v183, %v179
  %v232 = vpack.c.b16 %v184, %v180
  %v233 = vpack.c.b16 %v185, %v181
  %v234 = vpack.c.b16 %v190, %v186
  %v235 = vpack.c.b16 %v191, %v187
  %v236 = vpack.c.b16 %v192, %v188
  %v237 = vpack.c.b16 %v193, %v189
  %v238 = vpack.c.b16 %v198, %v194
  %v239 = vpack.c.b16 %v199, %v195
  %v240 = vpack.c.b16 %v200, %v196
  %v241 = vpack.c.b16 %v201, %v197
  %v242 = vpack.c.b16 %v206, %v202
  %v243 = vpack.c.b16 %v207, %v203
  %v244 = vpack.c.b16 %v208, %v204
  %v245 = vpack.c.b16 %v209, %v205
  %v246 = vpack.c.b16 %v214, %v210
  %v247 = vpack.c.b16 %v215, %v211
  %v248 = vpack.c.b16 %v216, %v212
  %v249 = vpack.c.b16 %v217, %v213
  %282 = vmatprep.subr.bf16.mxu0 %v247
  %283 = vmatpush1.bf16.msra.mxu0 %v246
  %284 = vmatprep.subr.bf16.mxu0 %v243
  %285 = vmatpush1.bf16.msra.mxu0 %v242
  %286 = vmatprep.subr.bf16.mxu0 %v239
  %287 = vmatpush1.bf16.msra.mxu0 %v238
  %288 = vmatprep.subr.bf16.mxu0 %v235
  %289 = vmatpush1.bf16.msra.mxu0 %v234
  %290 = vmatprep.subr.bf16.mxu0 %v231
  %291 = vmatpush1.bf16.msra.mxu0 %v230
  %292 = vmatprep.subr.bf16.mxu0 %v227
  %293 = vmatpush1.bf16.msra.mxu0 %v226
  %294 = vmatprep.subr.bf16.mxu0 %v223
  %295 = vmatpush1.bf16.msra.mxu0 %v222
  %296 = vmatprep.subr.bf16.mxu0 %v219
  %297 = vmatpush1.bf16.msra.mxu0 %v218
  %298 = vmatprep.subr.bf16.mxu0 0
  %299 = vmatpush2.bf16.msra.mxu0 0
  %300 = vmatprep.subr.bf16.mxu0 0
  %301 = vmatpush2.bf16.msra.mxu0 0
  %302 = vmatprep.subr.bf16.mxu0 0
  %303 = vmatpush2.bf16.msra.mxu0 0
  %304 = vmatprep.subr.bf16.mxu0 0
  %305 = vmatpush2.bf16.msra.mxu0 0
  %306 = vmatprep.subr.bf16.mxu0 0
  %307 = vmatpush2.bf16.msra.mxu0 0
  %308 = vmatprep.subr.bf16.mxu0 0
  %309 = vmatpush2.bf16.msra.mxu0 0
  %310 = vmatprep.subr.bf16.mxu0 0
  %311 = vmatpush2.bf16.msra.mxu0 0
  %312 = vmatprep.subr.bf16.mxu0 0
  %313 = vmatpush2.bf16.msra.mxu0 0
  %314 = vmatprep.mubr.bf16.mxu0 0
  %315 = vmatmul.mubr.bf16.gmra.mxu0 %v67
  %v316 = vpop.f32.mrf.mxu0
  %v317 = vadd.f32 %v105, %v316
  %v318 = vpop.f32.mrf.mxu0
  %v319 = vadd.f32 %v109, %v318
  %v320 = vpop.f32.mrf.mxu0
  %v321 = vadd.f32 %v105, %v320
  %v322 = vpop.f32.mrf.mxu0
  %v323 = vadd.f32 %v109, %v322
  %324 = vdwg.mxu0
  %325 = vmatprep.subr.bf16.mxu0 %v249
  %326 = vmatpush1.bf16.msra.mxu0 %v248
  %327 = vmatprep.subr.bf16.mxu0 %v245
  %328 = vmatpush1.bf16.msra.mxu0 %v244
  %329 = vmatprep.subr.bf16.mxu0 %v241
  %330 = vmatpush1.bf16.msra.mxu0 %v240
  %331 = vmatprep.subr.bf16.mxu0 %v237
  %332 = vmatpush1.bf16.msra.mxu0 %v236
  %333 = vmatprep.subr.bf16.mxu0 %v233
  %334 = vmatpush1.bf16.msra.mxu0 %v232
  %335 = vmatprep.subr.bf16.mxu0 %v229
  %336 = vmatpush1.bf16.msra.mxu0 %v228
  %337 = vmatprep.subr.bf16.mxu0 %v225
  %338 = vmatpush1.bf16.msra.mxu0 %v224
  %339 = vmatprep.subr.bf16.mxu0 %v221
  %340 = vmatpush1.bf16.msra.mxu0 %v220
  %341 = vmatprep.subr.bf16.mxu0 0
  %342 = vmatpush2.bf16.msra.mxu0 0
  %343 = vmatprep.subr.bf16.mxu0 0
  %344 = vmatpush2.bf16.msra.mxu0 0
  %345 = vmatprep.subr.bf16.mxu0 0
  %346 = vmatpush2.bf16.msra.mxu0 0
  %347 = vmatprep.subr.bf16.mxu0 0
  %348 = vmatpush2.bf16.msra.mxu0 0
  %349 = vmatprep.subr.bf16.mxu0 0
  %350 = vmatpush2.bf16.msra.mxu0 0
  %351 = vmatprep.subr.bf16.mxu0 0
  %352 = vmatpush2.bf16.msra.mxu0 0
  %353 = vmatprep.subr.bf16.mxu0 0
  %354 = vmatpush2.bf16.msra.mxu0 0
  %355 = vmatprep.subr.bf16.mxu0 0
  %356 = vmatpush2.bf16.msra.mxu0 0
  %357 = vmatprep.mubr.bf16.mxu0 0
  %358 = vmatmul.mubr.bf16.gmra.mxu0 %v67
  %v359 = vpop.f32.mrf.mxu0
  %v360 = vadd.f32 %v113, %v359
  %v361 = vpop.f32.mrf.mxu0
  %v362 = vadd.f32 %v117, %v361
  %v363 = vpop.f32.mrf.mxu0
  %v364 = vadd.f32 %v113, %v363
  %v365 = vpop.f32.mrf.mxu0
  %v366 = vadd.f32 %v117, %v365
  %367 = vdwg.mxu0
  %v368 = vmul.f32 %v317, 0.5
  %v369 = vmul.f32 %v319, 0.5
  %v370 = vmul.f32 %v360, 0.5
  %v371 = vmul.f32 %v362, 0.5
  %v372 = vmul.f32 %v321, 0.5
  %v373 = vmul.f32 %v323, 0.5
  %v374 = vmul.f32 %v364, 0.5
  %v375 = vmul.f32 %v366, 0.5
  %v376 = vmul.f32 %v317, 0.044715
  %v377 = vmul.f32 %v319, 0.044715
  %v378 = vmul.f32 %v360, 0.044715
  %v379 = vmul.f32 %v362, 0.044715
  %v380 = vmul.f32 %v321, 0.044715
  %v381 = vmul.f32 %v323, 0.044715
  %v382 = vmul.f32 %v364, 0.044715
  %v383 = vmul.f32 %v366, 0.044715
  %v384 = vmul.f32 %v376, %v317
  %v385 = vmul.f32 %v377, %v319
  %v386 = vmul.f32 %v378, %v360
  %v387 = vmul.f32 %v379, %v362
  %v388 = vmul.f32 %v380, %v321
  %v389 = vmul.f32 %v381, %v323
  %v390 = vmul.f32 %v382, %v364
  %v391 = vmul.f32 %v383, %v366
  %v392 = vmul.f32 %v384, %v317
  %v393 = vmul.f32 %v385, %v319
  %v394 = vmul.f32 %v386, %v360
  %v395 = vmul.f32 %v387, %v362
  %v396 = vmul.f32 %v388, %v321
  %v397 = vmul.f32 %v389, %v323
  %v398 = vmul.f32 %v390, %v364
  %v399 = vmul.f32 %v391, %v366
  %v400 = vadd.f32 %v317, %v392
  %v401 = vadd.f32 %v319, %v393
  %v402 = vadd.f32 %v360, %v394
  %v403 = vadd.f32 %v362, %v395
  %v404 = vadd.f32 %v321, %v396
  %v405 = vadd.f32 %v323, %v397
  %v406 = vadd.f32 %v364, %v398
  %v407 = vadd.f32 %v366, %v399
  %v408 = vmul.f32 %v400, 0.7978846
  %v409 = vmul.f32 %v401, 0.7978846
  %v410 = vmul.f32 %v402, 0.7978846
  %v411 = vmul.f32 %v403, 0.7978846
  %v412 = vmul.f32 %v404, 0.7978846
  %v413 = vmul.f32 %v405, 0.7978846
  %v414 = vmul.f32 %v406, 0.7978846
  %v415 = vmul.f32 %v407, 0.7978846
  %v416 = vtanh.pop %v408
  %v417 = vtanh.pop %v409
  %v418 = vtanh.pop %v410
  %v419 = vtanh.pop %v411
  %v420 = vtanh.pop %v412
  %v421 = vtanh.pop %v413
  %v422 = vtanh.pop %v414
  %v423 = vtanh.pop %v415
  %v424 = vadd.f32 %v416, 1.0
  %v425 = vadd.f32 %v417, 1.0
  %v426 = vadd.f32 %v418, 1.0
  %v427 = vadd.f32 %v419, 1.0
  %v428 = vadd.f32 %v420, 1.0
  %v429 = vadd.f32 %v421, 1.0
  %v430 = vadd.f32 %v422, 1.0
  %v431 = vadd.f32 %v423, 1.0
  %v432 = vmul.f32 %v368, %v424
  %v433 = vmul.f32 %v369, %v425
  %v434 = vmul.f32 %v370, %v426
  %v435 = vmul.f32 %v371, %v427
  %v436 = vmul.f32 %v372, %v428
  %v437 = vmul.f32 %v373, %v429
  %v438 = vmul.f32 %v374, %v430
  %v439 = vmul.f32 %v375, %v431
  %v440 = vpack.c.bf16 %v436, %v432
  %v441 = vpack.c.bf16 %v437, %v433
  %v442 = vpack.c.bf16 %v438, %v434
  %v443 = vpack.c.bf16 %v439, %v435
  %v448 = vunpack.c.l.b16 %v440
  %v449 = vunpack.c.l.b16 %v441
  %v450 = vunpack.c.l.b16 %v442
  %v451 = vunpack.c.l.b16 %v443
  %v452 = vunpack.c.h.b16 %v440
  %v453 = vunpack.c.h.b16 %v441
  %v454 = vunpack.c.h.b16 %v442
  %v455 = vunpack.c.h.b16 %v443
  %v456 = vpack.c.b16 %v449, %v448
  %v457 = vpack.c.b16 %v451, %v450
  %v458 = vpack.c.b16 %v453, %v452
  %v459 = vpack.c.b16 %v455, %v454
  %464 = vst [vmem:[%s5] sm:$0xff] %v456
  %465 = vst [vmem:[%s5 + $0x8] sm:$0xff] %v457
  %466 = vst [vmem:[%s5 + $0x10] sm:$0x11] %v458
  %467 = vst [vmem:[%s5 + $0x18] sm:$0x11] %v459
  // Predicated region
  $region22: #{dino_vit_forward.16} parent=0 // pred_check
    _
  $region23: #{dino_vit_forward.16} parent=0 // pred_check_branch
    %469 = sbr.rel (0) target = $region25
  $region24: #{dino_vit_forward.16} parent=0 // pred_region
    _
  $region25: #{dino_vit_forward.16} parent=0 // pred_fallthru
    _
  // Predicated region
  $region26: #{dino_vit_forward.16} parent=0 // pred_check
    _
  $region27: #{dino_vit_forward.16} parent=0 // pred_check_branch
    %471 = sbr.rel (0) target = $region29
  $region28: #{dino_vit_forward.16} parent=0 // pred_region
    _
  $region29: #{dino_vit_forward.16} parent=0 // pred_fallthru
    _

// kernel: dino_vit_forward.17
$region0: #{dino_vit_forward.17}
  #allocation0 [shape = 'u32[]', space=smem, size = 0x4, offset = 0x4, fixed_abs, tag = 'smem constant byte address 0x4 - core index']
  #allocation1 [shape = 'u32[144,128]{1,0:T(1,128)}', space=vmem, size = 0x12000, scoped, tag = 'internal scratch']
  %s0 = inlined_call_operand.vmem [shape: bf16[10,512], index: 0, kind: input, shape index: {}]
  %s1 = inlined_call_operand.vmem [shape: bf16[512,128], index: 1, kind: input, shape index: {}]
  %s2 = inlined_call_operand.vmem [shape: f32[1,128], index: 2, kind: input, shape index: {}]
  %s3 = inlined_call_operand.vmem [shape: f32[10,128], index: 3, kind: input, shape index: {}]
  %s4 = inlined_call_operand.vmem [shape: f32[10,128], index: 4, kind: output, shape index: {}]
  %s5 = sld [smem:[#allocation0]]
  $region26: #{dino_vit_forward.17} parent=0
    _
  %s7 = ssub.s32 1, %s5
  %s8 = scalar_select 0, %s7, %s5
  // Predicated region
  $region2: #{dino_vit_forward.17} parent=0 // pred_check
    _
  $region3: #{dino_vit_forward.17} parent=0 // pred_check_branch
    %10 = sbr.rel (0) target = $region5
  $region4: #{dino_vit_forward.17} parent=0 // pred_region
    _
  $region5: #{dino_vit_forward.17} parent=0 // pred_fallthru
    _
  // Predicated region
  $region6: #{dino_vit_forward.17} parent=0 // pred_check
    _
  $region7: #{dino_vit_forward.17} parent=0 // pred_check_branch
    %12 = sbr.rel (0) target = $region9
  $region8: #{dino_vit_forward.17} parent=0 // pred_region
    _
  $region9: #{dino_vit_forward.17} parent=0 // pred_fallthru
    _
  // Predicated region
  $region10: #{dino_vit_forward.17} parent=0 // pred_check
    _
  $region11: #{dino_vit_forward.17} parent=0 // pred_check_branch
    %14 = sbr.rel (0) target = $region13
  $region12: #{dino_vit_forward.17} parent=0 // pred_region
    _
  $region13: #{dino_vit_forward.17} parent=0 // pred_fallthru
    _
  // Predicated region
  $region14: #{dino_vit_forward.17} parent=0 // pred_check
    _
  $region15: #{dino_vit_forward.17} parent=0 // pred_check_branch
    %16 = sbr.rel (0) target = $region17
  $region16: #{dino_vit_forward.17} parent=0 // pred_region
    _
  $region17: #{dino_vit_forward.17} parent=0 // pred_fallthru
    _
  %v18 = vld [vmem:[%s0] sm:$0xff]
  %v19 = vld [vmem:[%s0 + $0x8] sm:$0xff]
  %v20 = vld [vmem:[%s0 + $0x10] sm:$0x11]
  %v21 = vld [vmem:[%s0 + $0x18] sm:$0x11]
  %v22 = vld [vmem:[%s1] sm:$0xf]
  %v23 = vld [vmem:[%s1 + $0x4] sm:$0xf]
  %v24 = vld [vmem:[%s1 + $0x8] sm:$0xf]
  %v25 = vld [vmem:[%s1 + $0xc] sm:$0xf]
  %v26 = vld [vmem:[%s1 + $0x10] sm:$0xf]
  %v27 = vld [vmem:[%s1 + $0x14] sm:$0xf]
  %v28 = vld [vmem:[%s1 + $0x18] sm:$0xf]
  %v29 = vld [vmem:[%s1 + $0x1c] sm:$0xf]
  %v30 = vld [vmem:[%s1 + $0x20] sm:$0xf]
  %v31 = vld [vmem:[%s1 + $0x24] sm:$0xf]
  %v32 = vld [vmem:[%s1 + $0x28] sm:$0xf]
  %v33 = vld [vmem:[%s1 + $0x2c] sm:$0xf]
  %v34 = vld [vmem:[%s1 + $0x30] sm:$0xf]
  %v35 = vld [vmem:[%s1 + $0x34] sm:$0xf]
  %v36 = vld [vmem:[%s1 + $0x38] sm:$0xf]
  %v37 = vld [vmem:[%s1 + $0x3c] sm:$0xf]
  %v38 = vld [vmem:[%s1 + $0x40] sm:$0xf]
  %v39 = vld [vmem:[%s1 + $0x44] sm:$0xf]
  %v40 = vld [vmem:[%s1 + $0x48] sm:$0xf]
  %v41 = vld [vmem:[%s1 + $0x4c] sm:$0xf]
  %v42 = vld [vmem:[%s1 + $0x50] sm:$0xf]
  %v43 = vld [vmem:[%s1 + $0x54] sm:$0xf]
  %v44 = vld [vmem:[%s1 + $0x58] sm:$0xf]
  %v45 = vld [vmem:[%s1 + $0x5c] sm:$0xf]
  %v46 = vld [vmem:[%s1 + $0x60] sm:$0xf]
  %v47 = vld [vmem:[%s1 + $0x64] sm:$0xf]
  %v48 = vld [vmem:[%s1 + $0x68] sm:$0xf]
  %v49 = vld [vmem:[%s1 + $0x6c] sm:$0xf]
  %v50 = vld [vmem:[%s1 + $0x70] sm:$0xf]
  %v51 = vld [vmem:[%s1 + $0x74] sm:$0xf]
  %v52 = vld [vmem:[%s1 + $0x78] sm:$0xf]
  %v53 = vld [vmem:[%s1 + $0x7c] sm:$0xf]
  %v54 = vld [vmem:[%s1 + $0x80] sm:$0xf]
  %v55 = vld [vmem:[%s1 + $0x84] sm:$0xf]
  %v56 = vld [vmem:[%s1 + $0x88] sm:$0xf]
  %v57 = vld [vmem:[%s1 + $0x8c] sm:$0xf]
  %v58 = vld [vmem:[%s1 + $0x90] sm:$0xf]
  %v59 = vld [vmem:[%s1 + $0x94] sm:$0xf]
  %v60 = vld [vmem:[%s1 + $0x98] sm:$0xf]
  %v61 = vld [vmem:[%s1 + $0x9c] sm:$0xf]
  %v62 = vld [vmem:[%s1 + $0xa0] sm:$0xf]
  %v63 = vld [vmem:[%s1 + $0xa4] sm:$0xf]
  %v64 = vld [vmem:[%s1 + $0xa8] sm:$0xf]
  %v65 = vld [vmem:[%s1 + $0xac] sm:$0xf]
  %v66 = vld [vmem:[%s1 + $0xb0] sm:$0xf]
  %v67 = vld [vmem:[%s1 + $0xb4] sm:$0xf]
  %v68 = vld [vmem:[%s1 + $0xb8] sm:$0xf]
  %v69 = vld [vmem:[%s1 + $0xbc] sm:$0xf]
  %v70 = vld [vmem:[%s1 + $0xc0] sm:$0xf]
  %v71 = vld [vmem:[%s1 + $0xc4] sm:$0xf]
  %v72 = vld [vmem:[%s1 + $0xc8] sm:$0xf]
  %v73 = vld [vmem:[%s1 + $0xcc] sm:$0xf]
  %v74 = vld [vmem:[%s1 + $0xd0] sm:$0xf]
  %v75 = vld [vmem:[%s1 + $0xd4] sm:$0xf]
  %v76 = vld [vmem:[%s1 + $0xd8] sm:$0xf]
  %v77 = vld [vmem:[%s1 + $0xdc] sm:$0xf]
  %v78 = vld [vmem:[%s1 + $0xe0] sm:$0xf]
  %v79 = vld [vmem:[%s1 + $0xe4] sm:$0xf]
  %v80 = vld [vmem:[%s1 + $0xe8] sm:$0xf]
  %v81 = vld [vmem:[%s1 + $0xec] sm:$0xf]
  %v82 = vld [vmem:[%s1 + $0xf0] sm:$0xf]
  %v83 = vld [vmem:[%s1 + $0xf4] sm:$0xf]
  %v84 = vld [vmem:[%s1 + $0xf8] sm:$0xf]
  %v85 = vld [vmem:[%s1 + $0xfc] sm:$0xf]
  %v86 = vld [vmem:[%s2] sm:$0x1]
  %v88 = vlaneseq
  %v89 = vshrl.u32 %v88, 7
  %v90 = vsub.s32 0, %v89
  %v91 = vrot.slane %v86, %v90
  %v97 = vunpack.c.l.b16 %v18
  %v98 = vunpack.c.h.b16 %v18
  %v99 = vunpack.c.l.b16 %v19
  %v100 = vunpack.c.h.b16 %v19
  %v101 = vunpack.c.l.b16 %v20
  %v102 = vunpack.c.h.b16 %v20
  %v103 = vunpack.c.l.b16 %v21
  %v104 = vunpack.c.h.b16 %v21
  %v105 = vpack.c.b16 %v101, %v97
  %v106 = vpack.c.b16 %v102, %v98
  %v107 = vpack.c.b16 %v103, %v99
  %v108 = vpack.c.b16 %v104, %v100
  %v177 = vunpack.c.l.b16 %v22
  %v178 = vunpack.c.l.b16 %v23
  %v179 = vunpack.c.l.b16 %v24
  %v180 = vunpack.c.l.b16 %v25
  %v181 = vunpack.c.l.b16 %v26
  %v182 = vunpack.c.l.b16 %v27
  %v183 = vunpack.c.l.b16 %v28
  %v184 = vunpack.c.l.b16 %v29
  %v185 = vunpack.c.l.b16 %v30
  %v186 = vunpack.c.l.b16 %v31
  %v187 = vunpack.c.l.b16 %v32
  %v188 = vunpack.c.l.b16 %v33
  %v189 = vunpack.c.l.b16 %v34
  %v190 = vunpack.c.l.b16 %v35
  %v191 = vunpack.c.l.b16 %v36
  %v192 = vunpack.c.l.b16 %v37
  %v193 = vunpack.c.l.b16 %v38
  %v194 = vunpack.c.l.b16 %v39
  %v195 = vunpack.c.l.b16 %v40
  %v196 = vunpack.c.l.b16 %v41
  %v197 = vunpack.c.l.b16 %v42
  %v198 = vunpack.c.l.b16 %v43
  %v199 = vunpack.c.l.b16 %v44
  %v200 = vunpack.c.l.b16 %v45
  %v201 = vunpack.c.l.b16 %v46
  %v202 = vunpack.c.l.b16 %v47
  %v203 = vunpack.c.l.b16 %v48
  %v204 = vunpack.c.l.b16 %v49
  %v205 = vunpack.c.l.b16 %v50
  %v206 = vunpack.c.l.b16 %v51
  %v207 = vunpack.c.l.b16 %v52
  %v208 = vunpack.c.l.b16 %v53
  %v209 = vunpack.c.l.b16 %v54
  %v210 = vunpack.c.l.b16 %v55
  %v211 = vunpack.c.l.b16 %v56
  %v212 = vunpack.c.l.b16 %v57
  %v213 = vunpack.c.l.b16 %v58
  %v214 = vunpack.c.l.b16 %v59
  %v215 = vunpack.c.l.b16 %v60
  %v216 = vunpack.c.l.b16 %v61
  %v217 = vunpack.c.l.b16 %v62
  %v218 = vunpack.c.l.b16 %v63
  %v219 = vunpack.c.l.b16 %v64
  %v220 = vunpack.c.l.b16 %v65
  %v221 = vunpack.c.l.b16 %v66
  %v222 = vunpack.c.l.b16 %v67
  %v223 = vunpack.c.l.b16 %v68
  %v224 = vunpack.c.l.b16 %v69
  %v225 = vunpack.c.l.b16 %v70
  %v226 = vunpack.c.l.b16 %v71
  %v227 = vunpack.c.l.b16 %v72
  %v228 = vunpack.c.l.b16 %v73
  %v229 = vunpack.c.l.b16 %v74
  %v230 = vunpack.c.l.b16 %v75
  %v231 = vunpack.c.l.b16 %v76
  %v232 = vunpack.c.l.b16 %v77
  %v233 = vunpack.c.l.b16 %v78
  %v234 = vunpack.c.l.b16 %v79
  %v235 = vunpack.c.l.b16 %v80
  %v236 = vunpack.c.l.b16 %v81
  %v237 = vunpack.c.l.b16 %v82
  %v238 = vunpack.c.l.b16 %v83
  %v239 = vunpack.c.l.b16 %v84
  %v240 = vunpack.c.l.b16 %v85
  %v241 = vpack.c.b16 %v178, %v177
  %v242 = vpack.c.b16 %v180, %v179
  %v243 = vpack.c.b16 %v182, %v181
  %v244 = vpack.c.b16 %v184, %v183
  %v245 = vpack.c.b16 %v186, %v185
  %v246 = vpack.c.b16 %v188, %v187
  %v247 = vpack.c.b16 %v190, %v189
  %v248 = vpack.c.b16 %v192, %v191
  %v249 = vpack.c.b16 %v194, %v193
  %v250 = vpack.c.b16 %v196, %v195
  %v251 = vpack.c.b16 %v198, %v197
  %v252 = vpack.c.b16 %v200, %v199
  %v253 = vpack.c.b16 %v202, %v201
  %v254 = vpack.c.b16 %v204, %v203
  %v255 = vpack.c.b16 %v206, %v205
  %v256 = vpack.c.b16 %v208, %v207
  %v257 = vpack.c.b16 %v210, %v209
  %v258 = vpack.c.b16 %v212, %v211
  %v259 = vpack.c.b16 %v214, %v213
  %v260 = vpack.c.b16 %v216, %v215
  %v261 = vpack.c.b16 %v218, %v217
  %v262 = vpack.c.b16 %v220, %v219
  %v263 = vpack.c.b16 %v222, %v221
  %v264 = vpack.c.b16 %v224, %v223
  %v265 = vpack.c.b16 %v226, %v225
  %v266 = vpack.c.b16 %v228, %v227
  %v267 = vpack.c.b16 %v230, %v229
  %v268 = vpack.c.b16 %v232, %v231
  %v269 = vpack.c.b16 %v234, %v233
  %v270 = vpack.c.b16 %v236, %v235
  %v271 = vpack.c.b16 %v238, %v237
  %v272 = vpack.c.b16 %v240, %v239
  %305 = vmatprep.subr.bf16.mxu0 0
  %306 = vmatpush1.bf16.msra.mxu0 %v248
  %307 = vmatprep.subr.bf16.mxu0 0
  %308 = vmatpush1.bf16.msra.mxu0 %v247
  %309 = vmatprep.subr.bf16.mxu0 0
  %310 = vmatpush1.bf16.msra.mxu0 %v246
  %311 = vmatprep.subr.bf16.mxu0 0
  %312 = vmatpush1.bf16.msra.mxu0 %v245
  %313 = vmatprep.subr.bf16.mxu0 0
  %314 = vmatpush1.bf16.msra.mxu0 %v244
  %315 = vmatprep.subr.bf16.mxu0 0
  %316 = vmatpush1.bf16.msra.mxu0 %v243
  %317 = vmatprep.subr.bf16.mxu0 0
  %318 = vmatpush1.bf16.msra.mxu0 %v242
  %319 = vmatprep.subr.bf16.mxu0 0
  %320 = vmatpush1.bf16.msra.mxu0 %v241
  %321 = vmatprep.subr.bf16.mxu0 0
  %322 = vmatpush2.bf16.msra.mxu0 %v256
  %323 = vmatprep.subr.bf16.mxu0 0
  %324 = vmatpush2.bf16.msra.mxu0 %v255
  %325 = vmatprep.subr.bf16.mxu0 0
  %326 = vmatpush2.bf16.msra.mxu0 %v254
  %327 = vmatprep.subr.bf16.mxu0 0
  %328 = vmatpush2.bf16.msra.mxu0 %v253
  %329 = vmatprep.subr.bf16.mxu0 0
  %330 = vmatpush2.bf16.msra.mxu0 %v252
  %331 = vmatprep.subr.bf16.mxu0 0
  %332 = vmatpush2.bf16.msra.mxu0 %v251
  %333 = vmatprep.subr.bf16.mxu0 0
  %334 = vmatpush2.bf16.msra.mxu0 %v250
  %335 = vmatprep.subr.bf16.mxu0 0
  %336 = vmatpush2.bf16.msra.mxu0 %v249
  %337 = vmatprep.mubr.bf16.mxu0 %v106
  %338 = vmatmul.mubr.bf16.gmra.mxu0 %v105
  %v339 = vpop.f32.mrf.mxu0
  %v340 = vadd.f32 %v91, %v339
  %v341 = vpop.f32.mrf.mxu0
  %v342 = vpop.f32.mrf.mxu0
  %v343 = vadd.f32 %v91, %v342
  %v344 = vpop.f32.mrf.mxu0
  %345 = vdwg.mxu0
  %346 = vmatprep.subr.bf16.mxu0 0
  %347 = vmatpush1.bf16.msra.mxu0 %v264
  %348 = vmatprep.subr.bf16.mxu0 0
  %349 = vmatpush1.bf16.msra.mxu0 %v263
  %350 = vmatprep.subr.bf16.mxu0 0
  %351 = vmatpush1.bf16.msra.mxu0 %v262
  %352 = vmatprep.subr.bf16.mxu0 0
  %353 = vmatpush1.bf16.msra.mxu0 %v261
  %354 = vmatprep.subr.bf16.mxu0 0
  %355 = vmatpush1.bf16.msra.mxu0 %v260
  %356 = vmatprep.subr.bf16.mxu0 0
  %357 = vmatpush1.bf16.msra.mxu0 %v259
  %358 = vmatprep.subr.bf16.mxu0 0
  %359 = vmatpush1.bf16.msra.mxu0 %v258
  %360 = vmatprep.subr.bf16.mxu0 0
  %361 = vmatpush1.bf16.msra.mxu0 %v257
  %362 = vmatprep.subr.bf16.mxu0 0
  %363 = vmatpush2.bf16.msra.mxu0 %v272
  %364 = vmatprep.subr.bf16.mxu0 0
  %365 = vmatpush2.bf16.msra.mxu0 %v271
  %366 = vmatprep.subr.bf16.mxu0 0
  %367 = vmatpush2.bf16.msra.mxu0 %v270
  %368 = vmatprep.subr.bf16.mxu0 0
  %369 = vmatpush2.bf16.msra.mxu0 %v269
  %370 = vmatprep.subr.bf16.mxu0 0
  %371 = vmatpush2.bf16.msra.mxu0 %v268
  %372 = vmatprep.subr.bf16.mxu0 0
  %373 = vmatpush2.bf16.msra.mxu0 %v267
  %374 = vmatprep.subr.bf16.mxu0 0
  %375 = vmatpush2.bf16.msra.mxu0 %v266
  %376 = vmatprep.subr.bf16.mxu0 0
  %377 = vmatpush2.bf16.msra.mxu0 %v265
  %378 = vmatprep.mubr.bf16.mxu0 %v108
  %379 = vmatmul.mubr.bf16.gmra.mxu0 %v107
  %v380 = vpop.f32.mrf.mxu0
  %v381 = vadd.f32 %v340, %v380
  %v382 = vpop.f32.mrf.mxu0
  %v383 = vpop.f32.mrf.mxu0
  %v384 = vadd.f32 %v343, %v383
  %v385 = vpop.f32.mrf.mxu0
  %386 = vdwg.mxu0
  %v387 = vld [vmem:[%s3] sm:$0xff]
  %v388 = vld [vmem:[%s3 + $0x8] sm:$0x3]
  %v389 = vadd.f32 %v381, %v387
  %v390 = vadd.f32 %v384, %v388
  %391 = vst [vmem:[%s4] sm:$0xff] %v389
  %392 = vst [vmem:[%s4 + $0x8] sm:$0x3] %v390
  // Predicated region
  $region18: #{dino_vit_forward.17} parent=0 // pred_check
    _
  $region19: #{dino_vit_forward.17} parent=0 // pred_check_branch
    %394 = sbr.rel (0) target = $region21
  $region20: #{dino_vit_forward.17} parent=0 // pred_region
    _
  $region21: #{dino_vit_forward.17} parent=0 // pred_fallthru
    _
  // Predicated region
  $region22: #{dino_vit_forward.17} parent=0 // pred_check
    _
  $region23: #{dino_vit_forward.17} parent=0 // pred_check_branch
    %396 = sbr.rel (0) target = $region25
  $region24: #{dino_vit_forward.17} parent=0 // pred_region
    _
  $region25: #{dino_vit_forward.17} parent=0 // pred_fallthru
    _

// kernel: dino_vit_forward.23
$region0: #{dino_vit_forward.23}
  #allocation0 [shape = 'u32[]', space=smem, size = 0x4, offset = 0x4, fixed_abs, tag = 'smem constant byte address 0x4 - core index']
  #allocation1 [shape = 'u32[144,128]{1,0:T(1,128)}', space=vmem, size = 0x12000, scoped, tag = 'internal scratch']
  %s0 = inlined_call_operand.vmem [shape: f32[2,128], index: 0, kind: input, shape index: {}]
  %s1 = inlined_call_operand.vmem [shape: f32[1,128], index: 1, kind: input, shape index: {}]
  %s2 = inlined_call_operand.vmem [shape: f32[1,128], index: 2, kind: input, shape index: {}]
  %s3 = inlined_call_operand.hbm [shape: f32[2,128], index: 3, kind: output, shape index: {}]
  %s4 = sld [smem:[#allocation0]]
  $region22: #{dino_vit_forward.23} parent=0
    _
  %s6 = ssub.s32 1, %s4
  %s7 = scalar_select 0, %s6, %s4
  $region1: #{dino_vit_forward.23} parent=0
    #allocation2 [shape = 'u8[1024]{0}', space=vmem, size = 0x400, scoped, tag = 'output window, operand 0, single buffered']
    #allocation3 [shape = 's32[1]{0}', space=sflag, size = 0x4, scoped, tag = 'scoped memory for dino_vit_forward.23']
    %8 = vsyncpa [#allocation3], 0
    // Predicated region
    $region2: #{dino_vit_forward.23} parent=1 // pred_check
      _
    $region3: #{dino_vit_forward.23} parent=1 // pred_check_branch
      %10 = sbr.rel (0) target = $region5
    $region4: #{dino_vit_forward.23} parent=1 // pred_region
      _
    $region5: #{dino_vit_forward.23} parent=1 // pred_fallthru
      _
    // Predicated region
    $region6: #{dino_vit_forward.23} parent=1 // pred_check
      _
    $region7: #{dino_vit_forward.23} parent=1 // pred_check_branch
      %12 = sbr.rel (0) target = $region9
    $region8: #{dino_vit_forward.23} parent=1 // pred_region
      _
    $region9: #{dino_vit_forward.23} parent=1 // pred_fallthru
      _
    // Predicated region
    $region10: #{dino_vit_forward.23} parent=1 // pred_check
      _
    $region11: #{dino_vit_forward.23} parent=1 // pred_check_branch
      %14 = sbr.rel (0) target = $region13
    $region12: #{dino_vit_forward.23} parent=1 // pred_region
      _
    $region13: #{dino_vit_forward.23} parent=1 // pred_fallthru
      _
    %v15 = vld [vmem:[%s0] sm:$0x3]
    %v16 = vld [vmem:[%s1] sm:$0x1]
    %v17 = vld [vmem:[%s2] sm:$0x1]
    %vm18 = vcmask 1041408
    %v19 = vsel %vm18, %v15, 0.0
    %20 = vadd.xlane.f32.xlu0 %v19
    %v21 = vpop.xlane.xlu0 %20
    %v22 = vrcp.pop 128.0
    %v23 = vmul.f32 %v21, %v22
    %v24 = vsub.f32 %v15, %v23
    %v25 = vmul.f32 %v24, %v24
    %v26 = vsel %vm18, %v25, 0.0
    %27 = vadd.xlane.f32.xlu0 %v26
    %v28 = vpop.xlane.xlu0 %27
    %v29 = vmul.f32 %v28, %v22
    %v30 = vadd.f32 %v29, 1e-06
    %v31 = vrsqrt.pop %v30
    %v32 = vmul.f32 %v24, %v31
    %v34 = vlaneseq
    %v35 = vshrl.u32 %v34, 7
    %v36 = vsub.s32 0, %v35
    %v37 = vrot.slane %v16, %v36
    %v39 = vmul.f32 %v32, %v37
    %v41 = vlaneseq
    %v42 = vshrl.u32 %v41, 7
    %v43 = vsub.s32 0, %v42
    %v44 = vrot.slane %v17, %v43
    %v46 = vadd.f32 %v39, %v44
    %47 = vst [vmem:[#allocation2] sm:$0x3] %v46
    // Predicated region
    $region14: #{dino_vit_forward.23} parent=1 // pred_check
      _
    $region15: #{dino_vit_forward.23} parent=1 // pred_check_branch
      %49 = sbr.rel (0) target = $region17
    $region16: #{dino_vit_forward.23} parent=1 // pred_region
      %s51 = ssub.s32 32, 32
      %52 = vsyncadd [#allocation3], %s51
      %s54 = sshll.u32 [#allocation2], 4
      %s55 = int_to_ptr.vmem [resolvable:$true] %s54
      %57 = dma.vmem_to_hbm [thread:$0]  %s55, 32, %s3, [#allocation3]
    $region17: #{dino_vit_forward.23} parent=1 // pred_fallthru
      _
    // Predicated region
    $region18: #{dino_vit_forward.23} parent=1 // pred_check
      _
    $region19: #{dino_vit_forward.23} parent=1 // pred_check_branch
      %59 = sbr.rel (0) target = $region21
    $region20: #{dino_vit_forward.23} parent=1 // pred_region
      %60 = dma.done [#allocation3], 32
    $region21: #{dino_vit_forward.23} parent=1 // pred_fallthru
      _
    %61 = vsyncpa [#allocation3], 1

</llo_original>
